<compile_context>
chip_gen: v7x
topology: tpu7x:2x2x1
jax: 0.10.0
libtpu: 0.0.40
codegen_flags: <defaults>
</compile_context>

<pallas_src>
import jax
import jax.numpy as jnp
from jax.experimental import pallas as pl
from jax.experimental.pallas import tpu as pltpu


def _ceil_to(x, m):
    return ((x + m - 1) // m) * m


# -----------------------------------------------------------------------------
# Across-channel LRN kernel: rows = N*H*W on sublanes, channels on lanes.
# Window sum over channels via masked lane rolls; out = x * z**(-beta).
# -----------------------------------------------------------------------------
def _make_lrn_across_kernel(alpha_over_n, beta, half, cp):
    use_rsqrt = (float(beta) == 0.75)

    def kernel(x_ref, o_ref):
        x = x_ref[...].astype(jnp.float32)            # (tm, Cp)
        xsq = x * x
        s = xsq
        if half > 0:
            lane = jax.lax.broadcasted_iota(jnp.int32, x.shape, 1)
            for d in range(1, half + 1):
                # contribution of channel c+d  (zero beyond the top edge)
                hi = pltpu.roll(xsq, shift=(-d) % cp, axis=1)
                s = s + jnp.where(lane < cp - d, hi, 0.0)
                # contribution of channel c-d  (zero below channel 0)
                lo = pltpu.roll(xsq, shift=d, axis=1)
                s = s + jnp.where(lane >= d, lo, 0.0)
        z = alpha_over_n * s + 1.0
        if use_rsqrt:
            r = jax.lax.rsqrt(z)
            factor = r * jnp.sqrt(r)                  # z ** -0.75
        else:
            factor = jnp.exp(-beta * jnp.log(z))      # generic beta fallback
        o_ref[...] = (x * factor).astype(o_ref.dtype)

    return kernel


def lrn_across_channels(x_nchw, local_size=1, alpha=1.0, beta=0.75, tm=2048):
    """PyTorch-equivalent across-channel LRN; x is NCHW, odd local_size."""
    N, C, H, W = x_nchw.shape
    half = (local_size - 1) // 2
    M = N * H * W
    Cp = _ceil_to(C, 128)                             # lane-dense channel dim

    # big row tiles (mem-bound), budgeted for double-buffered in+out < 24 MiB
    tm = min(int(tm), _ceil_to(M, 8))
    while tm > 8 and 4 * tm * Cp * 4 > (24 << 20):
        tm //= 2
    tm = max(8, (tm // 8) * 8)
    Mp = _ceil_to(M, tm)

    x2d = jnp.transpose(x_nchw, (0, 2, 3, 1)).reshape(M, C)
    x2d = jnp.pad(x2d, ((0, Mp - M), (0, Cp - C)))    # zero pad rows + channels

    out = pl.pallas_call(
        _make_lrn_across_kernel(alpha / local_size, beta, half, Cp),
        out_shape=jax.ShapeDtypeStruct((Mp, Cp), x_nchw.dtype),
        grid_spec=pltpu.PrefetchScalarGridSpec(
            num_scalar_prefetch=0,
            grid=(Mp // tm,),
            in_specs=[pl.BlockSpec((tm, Cp), lambda i: (i, 0))],
            out_specs=pl.BlockSpec((tm, Cp), lambda i: (i, 0)),
        ),
        compiler_params=pltpu.CompilerParams(
            dimension_semantics=("parallel",)),
    )(x2d)
    out = out[:M, :C].reshape(N, H, W, C)
    return jnp.transpose(out, (0, 3, 1, 2))


# -----------------------------------------------------------------------------
# Within-channel LRN kernel (ACROSS_CHANNELS=False): one (H, W) plane per grid
# step; separable spatial window sum via masked sublane (H) and lane (W) rolls.
# -----------------------------------------------------------------------------
def _make_lrn_within_kernel(alpha_over_n2, beta, half, hp, wp):
    use_rsqrt = (float(beta) == 0.75)

    def kernel(x_ref, o_ref):
        x = x_ref[0].astype(jnp.float32)              # (Hp, Wp)
        xsq = x * x
        sh = xsq
        if half > 0:
            col = jax.lax.broadcasted_iota(jnp.int32, x.shape, 1)
            for d in range(1, half + 1):
                rt = pltpu.roll(xsq, shift=(-d) % wp, axis=1)
                sh = sh + jnp.where(col < wp - d, rt, 0.0)
                lt = pltpu.roll(xsq, shift=d, axis=1)
                sh = sh + jnp.where(col >= d, lt, 0.0)
        s = sh
        if half > 0:
            row = jax.lax.broadcasted_iota(jnp.int32, x.shape, 0)
            for d in range(1, half + 1):
                dn = pltpu.roll(sh, shift=(-d) % hp, axis=0)
                s = s + jnp.where(row < hp - d, dn, 0.0)
                up = pltpu.roll(sh, shift=d, axis=0)
                s = s + jnp.where(row >= d, up, 0.0)
        z = alpha_over_n2 * s + 1.0
        if use_rsqrt:
            r = jax.lax.rsqrt(z)
            factor = r * jnp.sqrt(r)                  # z ** -0.75
        else:
            factor = jnp.exp(-beta * jnp.log(z))
        o_ref[0] = (x * factor).astype(o_ref.dtype)

    return kernel


def lrn_within_channel(x_nchw, local_size=1, alpha=1.0, beta=0.75):
    """PyTorch-equivalent within-channel LRN (AvgPool2d on x^2); x is NCHW."""
    N, C, H, W = x_nchw.shape
    half = (local_size - 1) // 2
    Hp = _ceil_to(H, 8)
    Wp = _ceil_to(W, 128)
    x3d = x_nchw.reshape(N * C, H, W)
    x3d = jnp.pad(x3d, ((0, 0), (0, Hp - H), (0, Wp - W)))

    out = pl.pallas_call(
        _make_lrn_within_kernel(alpha / (local_size * local_size), beta,
                                half, Hp, Wp),
        out_shape=jax.ShapeDtypeStruct((N * C, Hp, Wp), x_nchw.dtype),
        grid_spec=pltpu.PrefetchScalarGridSpec(
            num_scalar_prefetch=0,
            grid=(N * C,),
            in_specs=[pl.BlockSpec((1, Hp, Wp), lambda i: (i, 0, 0))],
            out_specs=pl.BlockSpec((1, Hp, Wp), lambda i: (i, 0, 0)),
        ),
        compiler_params=pltpu.CompilerParams(
            dimension_semantics=("parallel",)),
    )(x3d)
    return out[:, :H, :W].reshape(N, C, H, W)


# -----------------------------------------------------------------------------
# Module-equivalent wrapper (same constructor/forward semantics as torch LRN).
# -----------------------------------------------------------------------------
class LRN:
    def __init__(self, local_size=1, alpha=1.0, beta=0.75, ACROSS_CHANNELS=True):
        # NOTE: odd local_size assumed (even sizes also break the torch module).
        self.local_size = int(local_size)
        self.alpha = float(alpha)
        self.beta = float(beta)
        self.ACROSS_CHANNELS = bool(ACROSS_CHANNELS)

    def __call__(self, x_nchw):
        if self.ACROSS_CHANNELS:
            return lrn_across_channels(x_nchw, self.local_size, self.alpha,
                                       self.beta)
        return lrn_within_channel(x_nchw, self.local_size, self.alpha,
                                  self.beta)


# -----------------------------------------------------------------------------
# Pure-JAX references (mirror PyTorch semantics, count_include_pad=True)
# -----------------------------------------------------------------------------
def _lrn_across_reference(x, local_size, alpha, beta):
    half = (local_size - 1) // 2
    N, C, H, W = x.shape
    xsq = x.astype(jnp.float32) ** 2
    p = jnp.pad(xsq, ((0, 0), (half, half), (0, 0), (0, 0)))
    s = jnp.zeros_like(xsq)
    for d in range(local_size):
        s = s + p[:, d:d + C]
    div = (alpha * s / local_size + 1.0) ** beta
    return (x / div).astype(x.dtype)


def _lrn_within_reference(x, local_size, alpha, beta):
    half = (local_size - 1) // 2
    N, C, H, W = x.shape
    xsq = x.astype(jnp.float32) ** 2
    p = jnp.pad(xsq, ((0, 0), (0, 0), (half, half), (half, half)))
    s = jnp.zeros_like(xsq)
    for di in range(local_size):
        for dj in range(local_size):
            s = s + p[:, :, di:di + H, dj:dj + W]
    div = (alpha * s / (local_size * local_size) + 1.0) ** beta
    return (x / div).astype(x.dtype)


if __name__ == "__main__":
    key = jax.random.PRNGKey(0)
    k1, k2, k3 = jax.random.split(key, 3)

    # AlexNet-style usage: across channels, local_size=5, alpha=1e-4, beta=0.75
    x1 = jax.random.normal(k1, (2, 96, 14, 14), jnp.float32)
    lrn1 = LRN(local_size=5, alpha=1e-4, beta=0.75, ACROSS_CHANNELS=True)
    y1 = jax.block_until_ready(jax.jit(lrn1.__call__)(x1))
    r1 = _lrn_across_reference(x1, 5, 1e-4, 0.75)
    assert y1.shape == x1.shape
    assert jnp.allclose(y1, r1, rtol=1e-4, atol=1e-4), \
        float(jnp.max(jnp.abs(y1 - r1)))

    # Module defaults: local_size=1, alpha=1.0, beta=0.75, across channels
    x2 = jax.random.normal(k2, (2, 4, 16, 16), jnp.float32)
    lrn2 = LRN()
    y2 = jax.block_until_ready(lrn2(x2))
    r2 = _lrn_across_reference(x2, 1, 1.0, 0.75)
    assert jnp.allclose(y2, r2, rtol=1e-4, atol=1e-4), \
        float(jnp.max(jnp.abs(y2 - r2)))

    # Non-default branch: within-channel (spatial) normalization
    x3 = jax.random.normal(k3, (2, 4, 16, 16), jnp.float32)
    lrn3 = LRN(local_size=3, alpha=0.5, beta=0.75, ACROSS_CHANNELS=False)
    y3 = jax.block_until_ready(lrn3(x3))
    r3 = _lrn_within_reference(x3, 3, 0.5, 0.75)
    assert jnp.allclose(y3, r3, rtol=1e-4, atol=1e-4), \
        float(jnp.max(jnp.abs(y3 - r3)))

    print("KERNEL_OK")
</pallas_src>

<mosaic_0001>
module attributes {stable_mosaic.version = 11 : i64} {
  func.func @kernel(%arg0: i32, %arg1: memref<392x128xf32, #tpu.memory_space<vmem>>, %arg2: memref<392x128xf32, #tpu.memory_space<vmem>>) attributes {dimension_semantics = [#tpu.dimension_semantics<parallel>], iteration_bounds = array<i64: 1>, scalar_prefetch = 0 : i64, scratch_operands = 0 : i64, tpu.core_type = #tpu.core_type<tc>, window_params = [{transform_indices = @transform_0, window_bounds = array<i64: 392, 128>}, {transform_indices = @transform_1, window_bounds = array<i64: 392, 128>}]} {
    %c0 = arith.constant 0 : index
    %c0_0 = arith.constant 0 : index
    %0 = vector.load %arg1[%c0, %c0_0] : memref<392x128xf32, #tpu.memory_space<vmem>>, vector<392x128xf32>
    %1 = arith.mulf %0, %0 : vector<392x128xf32>
    %2 = tpu.iota {dimensions = array<i32: 1>} : vector<392x128xi32>
    %c127_i32 = arith.constant 127 : i32
    %3 = tpu.dynamic_rotate %1 by %c127_i32 dim 1 : vector<392x128xf32>, i32 -> vector<392x128xf32>
    %c127_i32_1 = arith.constant 127 : i32
    %4 = vector.broadcast %c127_i32_1 : i32 to vector<392x128xi32>
    %5 = arith.cmpi slt, %2, %4 : vector<392x128xi32>
    %cst = arith.constant 0.000000e+00 : f32
    %6 = vector.broadcast %cst : f32 to vector<392x128xf32>
    %7 = arith.select %5, %3, %6 : vector<392x128xi1>, vector<392x128xf32>
    %8 = arith.addf %1, %7 : vector<392x128xf32>
    %c1_i32 = arith.constant 1 : i32
    %9 = tpu.dynamic_rotate %1 by %c1_i32 dim 1 : vector<392x128xf32>, i32 -> vector<392x128xf32>
    %c1_i32_2 = arith.constant 1 : i32
    %10 = vector.broadcast %c1_i32_2 : i32 to vector<392x128xi32>
    %11 = arith.cmpi sge, %2, %10 : vector<392x128xi32>
    %cst_3 = arith.constant 0.000000e+00 : f32
    %12 = vector.broadcast %cst_3 : f32 to vector<392x128xf32>
    %13 = arith.select %11, %9, %12 : vector<392x128xi1>, vector<392x128xf32>
    %14 = arith.addf %8, %13 : vector<392x128xf32>
    %c126_i32 = arith.constant 126 : i32
    %15 = tpu.dynamic_rotate %1 by %c126_i32 dim 1 : vector<392x128xf32>, i32 -> vector<392x128xf32>
    %c126_i32_4 = arith.constant 126 : i32
    %16 = vector.broadcast %c126_i32_4 : i32 to vector<392x128xi32>
    %17 = arith.cmpi slt, %2, %16 : vector<392x128xi32>
    %cst_5 = arith.constant 0.000000e+00 : f32
    %18 = vector.broadcast %cst_5 : f32 to vector<392x128xf32>
    %19 = arith.select %17, %15, %18 : vector<392x128xi1>, vector<392x128xf32>
    %20 = arith.addf %14, %19 : vector<392x128xf32>
    %c2_i32 = arith.constant 2 : i32
    %21 = tpu.dynamic_rotate %1 by %c2_i32 dim 1 : vector<392x128xf32>, i32 -> vector<392x128xf32>
    %c2_i32_6 = arith.constant 2 : i32
    %22 = vector.broadcast %c2_i32_6 : i32 to vector<392x128xi32>
    %23 = arith.cmpi sge, %2, %22 : vector<392x128xi32>
    %cst_7 = arith.constant 0.000000e+00 : f32
    %24 = vector.broadcast %cst_7 : f32 to vector<392x128xf32>
    %25 = arith.select %23, %21, %24 : vector<392x128xi1>, vector<392x128xf32>
    %26 = arith.addf %20, %25 : vector<392x128xf32>
    %cst_8 = arith.constant 2.000000e-05 : f32
    %27 = vector.broadcast %cst_8 : f32 to vector<392x128xf32>
    %28 = arith.mulf %27, %26 : vector<392x128xf32>
    %cst_9 = arith.constant 1.000000e+00 : f32
    %29 = vector.broadcast %cst_9 : f32 to vector<392x128xf32>
    %30 = arith.addf %28, %29 : vector<392x128xf32>
    %31 = math.rsqrt %30 : vector<392x128xf32>
    %32 = math.sqrt %31 : vector<392x128xf32>
    %33 = arith.mulf %31, %32 : vector<392x128xf32>
    %34 = arith.mulf %0, %33 : vector<392x128xf32>
    %c0_10 = arith.constant 0 : index
    %c0_11 = arith.constant 0 : index
    %35 = vector.load %arg2[%c0_10, %c0_11] : memref<392x128xf32, #tpu.memory_space<vmem>>, vector<392x128xf32>
    tpu.vector_store %arg2[%c0_10, %c0_11], %34 {strides = array<i32>} : memref<392x128xf32, #tpu.memory_space<vmem>>, vector<392x128xf32>,
    return
  }
  func.func @transform_0(%arg0: i32) -> (i32, i32) {
    %c0_i32 = arith.constant 0 : i32
    %c0_i32_0 = arith.constant 0 : i32
    return %arg0, %c0_i32 : i32, i32
  }
  func.func @transform_1(%arg0: i32) -> (i32, i32) {
    %c0_i32 = arith.constant 0 : i32
    %c0_i32_0 = arith.constant 0 : i32
    return %arg0, %c0_i32 : i32, i32
  }
}

</mosaic_0001>

<llo_original>
// kernel: a_call__.1
$region0: #{a_call__.1}
  #allocation0 [shape = 'u32[]', space=smem, size = 0x4, offset = 0x4, fixed_abs, tag = 'smem constant byte address 0x4 - core index']
  #allocation1 [shape = 'u32[144,128]{1,0:T(1,128)}', space=vmem, size = 0x12000, scoped, tag = 'internal scratch']
  %s0 = inlined_call_operand.vmem [shape: f32[392,128], index: 0, kind: input, shape index: {}]
  %s1 = inlined_call_operand.vmem [shape: f32[392,128], index: 1, kind: output, shape index: {}]
  %s2 = sld [smem:[#allocation0]]
  $region14: #{a_call__.1} parent=0
    _
  %s4 = ssub.s32 1, %s2
  %s5 = scalar_select 0, %s4, %s2
  // Predicated region
  $region2: #{a_call__.1} parent=0 // pred_check
    _
  $region3: #{a_call__.1} parent=0 // pred_check_branch
    %7 = sbr.rel (0) target = $region5
  $region4: #{a_call__.1} parent=0 // pred_region
    _
  $region5: #{a_call__.1} parent=0 // pred_fallthru
    _
  %v8 = vld [vmem:[%s0] sm:$0xff]
  %v9 = vld [vmem:[%s0 + $0x8] sm:$0xff]
  %v10 = vld [vmem:[%s0 + $0x10] sm:$0xff]
  %v11 = vld [vmem:[%s0 + $0x18] sm:$0xff]
  %v12 = vld [vmem:[%s0 + $0x20] sm:$0xff]
  %v13 = vld [vmem:[%s0 + $0x28] sm:$0xff]
  %v14 = vld [vmem:[%s0 + $0x30] sm:$0xff]
  %v15 = vld [vmem:[%s0 + $0x38] sm:$0xff]
  %v16 = vld [vmem:[%s0 + $0x40] sm:$0xff]
  %v17 = vld [vmem:[%s0 + $0x48] sm:$0xff]
  %v18 = vld [vmem:[%s0 + $0x50] sm:$0xff]
  %v19 = vld [vmem:[%s0 + $0x58] sm:$0xff]
  %v20 = vld [vmem:[%s0 + $0x60] sm:$0xff]
  %v21 = vld [vmem:[%s0 + $0x68] sm:$0xff]
  %v22 = vld [vmem:[%s0 + $0x70] sm:$0xff]
  %v23 = vld [vmem:[%s0 + $0x78] sm:$0xff]
  %v24 = vld [vmem:[%s0 + $0x80] sm:$0xff]
  %v25 = vld [vmem:[%s0 + $0x88] sm:$0xff]
  %v26 = vld [vmem:[%s0 + $0x90] sm:$0xff]
  %v27 = vld [vmem:[%s0 + $0x98] sm:$0xff]
  %v28 = vld [vmem:[%s0 + $0xa0] sm:$0xff]
  %v29 = vld [vmem:[%s0 + $0xa8] sm:$0xff]
  %v30 = vld [vmem:[%s0 + $0xb0] sm:$0xff]
  %v31 = vld [vmem:[%s0 + $0xb8] sm:$0xff]
  %v32 = vld [vmem:[%s0 + $0xc0] sm:$0xff]
  %v33 = vld [vmem:[%s0 + $0xc8] sm:$0xff]
  %v34 = vld [vmem:[%s0 + $0xd0] sm:$0xff]
  %v35 = vld [vmem:[%s0 + $0xd8] sm:$0xff]
  %v36 = vld [vmem:[%s0 + $0xe0] sm:$0xff]
  %v37 = vld [vmem:[%s0 + $0xe8] sm:$0xff]
  %v38 = vld [vmem:[%s0 + $0xf0] sm:$0xff]
  %v39 = vld [vmem:[%s0 + $0xf8] sm:$0xff]
  %v40 = vld [vmem:[%s0 + $0x100] sm:$0xff]
  %v41 = vld [vmem:[%s0 + $0x108] sm:$0xff]
  %v42 = vld [vmem:[%s0 + $0x110] sm:$0xff]
  %v43 = vld [vmem:[%s0 + $0x118] sm:$0xff]
  %v44 = vld [vmem:[%s0 + $0x120] sm:$0xff]
  %v45 = vld [vmem:[%s0 + $0x128] sm:$0xff]
  %v46 = vld [vmem:[%s0 + $0x130] sm:$0xff]
  %v47 = vld [vmem:[%s0 + $0x138] sm:$0xff]
  %v48 = vld [vmem:[%s0 + $0x140] sm:$0xff]
  %v49 = vld [vmem:[%s0 + $0x148] sm:$0xff]
  %v50 = vld [vmem:[%s0 + $0x150] sm:$0xff]
  %v51 = vld [vmem:[%s0 + $0x158] sm:$0xff]
  %v52 = vld [vmem:[%s0 + $0x160] sm:$0xff]
  %v53 = vld [vmem:[%s0 + $0x168] sm:$0xff]
  %v54 = vld [vmem:[%s0 + $0x170] sm:$0xff]
  %v55 = vld [vmem:[%s0 + $0x178] sm:$0xff]
  %v56 = vld [vmem:[%s0 + $0x180] sm:$0xff]
  %v57 = vmul.f32 %v8, %v8
  %v58 = vmul.f32 %v9, %v9
  %v59 = vmul.f32 %v10, %v10
  %v60 = vmul.f32 %v11, %v11
  %v61 = vmul.f32 %v12, %v12
  %v62 = vmul.f32 %v13, %v13
  %v63 = vmul.f32 %v14, %v14
  %v64 = vmul.f32 %v15, %v15
  %v65 = vmul.f32 %v16, %v16
  %v66 = vmul.f32 %v17, %v17
  %v67 = vmul.f32 %v18, %v18
  %v68 = vmul.f32 %v19, %v19
  %v69 = vmul.f32 %v20, %v20
  %v70 = vmul.f32 %v21, %v21
  %v71 = vmul.f32 %v22, %v22
  %v72 = vmul.f32 %v23, %v23
  %v73 = vmul.f32 %v24, %v24
  %v74 = vmul.f32 %v25, %v25
  %v75 = vmul.f32 %v26, %v26
  %v76 = vmul.f32 %v27, %v27
  %v77 = vmul.f32 %v28, %v28
  %v78 = vmul.f32 %v29, %v29
  %v79 = vmul.f32 %v30, %v30
  %v80 = vmul.f32 %v31, %v31
  %v81 = vmul.f32 %v32, %v32
  %v82 = vmul.f32 %v33, %v33
  %v83 = vmul.f32 %v34, %v34
  %v84 = vmul.f32 %v35, %v35
  %v85 = vmul.f32 %v36, %v36
  %v86 = vmul.f32 %v37, %v37
  %v87 = vmul.f32 %v38, %v38
  %v88 = vmul.f32 %v39, %v39
  %v89 = vmul.f32 %v40, %v40
  %v90 = vmul.f32 %v41, %v41
  %v91 = vmul.f32 %v42, %v42
  %v92 = vmul.f32 %v43, %v43
  %v93 = vmul.f32 %v44, %v44
  %v94 = vmul.f32 %v45, %v45
  %v95 = vmul.f32 %v46, %v46
  %v96 = vmul.f32 %v47, %v47
  %v97 = vmul.f32 %v48, %v48
  %v98 = vmul.f32 %v49, %v49
  %v99 = vmul.f32 %v50, %v50
  %v100 = vmul.f32 %v51, %v51
  %v101 = vmul.f32 %v52, %v52
  %v102 = vmul.f32 %v53, %v53
  %v103 = vmul.f32 %v54, %v54
  %v104 = vmul.f32 %v55, %v55
  %v105 = vmul.f32 %v56, %v56
  %v106 = vlaneseq
  %v107 = vand.u32 %v106, 127
  %108 = vrot.lane.b32.xlu0 %v57, 127
  %v109 = vpop.permute.xlu0 %108
  %110 = vrot.lane.b32.xlu0 %v58, 127
  %v111 = vpop.permute.xlu0 %110
  %112 = vrot.lane.b32.xlu0 %v59, 127
  %v113 = vpop.permute.xlu0 %112
  %114 = vrot.lane.b32.xlu0 %v60, 127
  %v115 = vpop.permute.xlu0 %114
  %116 = vrot.lane.b32.xlu0 %v61, 127
  %v117 = vpop.permute.xlu0 %116
  %118 = vrot.lane.b32.xlu0 %v62, 127
  %v119 = vpop.permute.xlu0 %118
  %120 = vrot.lane.b32.xlu0 %v63, 127
  %v121 = vpop.permute.xlu0 %120
  %122 = vrot.lane.b32.xlu0 %v64, 127
  %v123 = vpop.permute.xlu0 %122
  %124 = vrot.lane.b32.xlu0 %v65, 127
  %v125 = vpop.permute.xlu0 %124
  %126 = vrot.lane.b32.xlu0 %v66, 127
  %v127 = vpop.permute.xlu0 %126
  %128 = vrot.lane.b32.xlu0 %v67, 127
  %v129 = vpop.permute.xlu0 %128
  %130 = vrot.lane.b32.xlu0 %v68, 127
  %v131 = vpop.permute.xlu0 %130
  %132 = vrot.lane.b32.xlu0 %v69, 127
  %v133 = vpop.permute.xlu0 %132
  %134 = vrot.lane.b32.xlu0 %v70, 127
  %v135 = vpop.permute.xlu0 %134
  %136 = vrot.lane.b32.xlu0 %v71, 127
  %v137 = vpop.permute.xlu0 %136
  %138 = vrot.lane.b32.xlu0 %v72, 127
  %v139 = vpop.permute.xlu0 %138
  %140 = vrot.lane.b32.xlu0 %v73, 127
  %v141 = vpop.permute.xlu0 %140
  %142 = vrot.lane.b32.xlu0 %v74, 127
  %v143 = vpop.permute.xlu0 %142
  %144 = vrot.lane.b32.xlu0 %v75, 127
  %v145 = vpop.permute.xlu0 %144
  %146 = vrot.lane.b32.xlu0 %v76, 127
  %v147 = vpop.permute.xlu0 %146
  %148 = vrot.lane.b32.xlu0 %v77, 127
  %v149 = vpop.permute.xlu0 %148
  %150 = vrot.lane.b32.xlu0 %v78, 127
  %v151 = vpop.permute.xlu0 %150
  %152 = vrot.lane.b32.xlu0 %v79, 127
  %v153 = vpop.permute.xlu0 %152
  %154 = vrot.lane.b32.xlu0 %v80, 127
  %v155 = vpop.permute.xlu0 %154
  %156 = vrot.lane.b32.xlu0 %v81, 127
  %v157 = vpop.permute.xlu0 %156
  %158 = vrot.lane.b32.xlu0 %v82, 127
  %v159 = vpop.permute.xlu0 %158
  %160 = vrot.lane.b32.xlu0 %v83, 127
  %v161 = vpop.permute.xlu0 %160
  %162 = vrot.lane.b32.xlu0 %v84, 127
  %v163 = vpop.permute.xlu0 %162
  %164 = vrot.lane.b32.xlu0 %v85, 127
  %v165 = vpop.permute.xlu0 %164
  %166 = vrot.lane.b32.xlu0 %v86, 127
  %v167 = vpop.permute.xlu0 %166
  %168 = vrot.lane.b32.xlu0 %v87, 127
  %v169 = vpop.permute.xlu0 %168
  %170 = vrot.lane.b32.xlu0 %v88, 127
  %v171 = vpop.permute.xlu0 %170
  %172 = vrot.lane.b32.xlu0 %v89, 127
  %v173 = vpop.permute.xlu0 %172
  %174 = vrot.lane.b32.xlu0 %v90, 127
  %v175 = vpop.permute.xlu0 %174
  %176 = vrot.lane.b32.xlu0 %v91, 127
  %v177 = vpop.permute.xlu0 %176
  %178 = vrot.lane.b32.xlu0 %v92, 127
  %v179 = vpop.permute.xlu0 %178
  %180 = vrot.lane.b32.xlu0 %v93, 127
  %v181 = vpop.permute.xlu0 %180
  %182 = vrot.lane.b32.xlu0 %v94, 127
  %v183 = vpop.permute.xlu0 %182
  %184 = vrot.lane.b32.xlu0 %v95, 127
  %v185 = vpop.permute.xlu0 %184
  %186 = vrot.lane.b32.xlu0 %v96, 127
  %v187 = vpop.permute.xlu0 %186
  %188 = vrot.lane.b32.xlu0 %v97, 127
  %v189 = vpop.permute.xlu0 %188
  %190 = vrot.lane.b32.xlu0 %v98, 127
  %v191 = vpop.permute.xlu0 %190
  %192 = vrot.lane.b32.xlu0 %v99, 127
  %v193 = vpop.permute.xlu0 %192
  %194 = vrot.lane.b32.xlu0 %v100, 127
  %v195 = vpop.permute.xlu0 %194
  %196 = vrot.lane.b32.xlu0 %v101, 127
  %v197 = vpop.permute.xlu0 %196
  %198 = vrot.lane.b32.xlu0 %v102, 127
  %v199 = vpop.permute.xlu0 %198
  %200 = vrot.lane.b32.xlu0 %v103, 127
  %v201 = vpop.permute.xlu0 %200
  %202 = vrot.lane.b32.xlu0 %v104, 127
  %v203 = vpop.permute.xlu0 %202
  %204 = vrot.lane.b32.xlu0 %v105, 127
  %v205 = vpop.permute.xlu0 %204
  %vm206 = vcmp.lt.s32.totalorder %v107, 127
  %v207 = vsel %vm206, %v109, 0.0
  %v208 = vsel %vm206, %v111, 0.0
  %v209 = vsel %vm206, %v113, 0.0
  %v210 = vsel %vm206, %v115, 0.0
  %v211 = vsel %vm206, %v117, 0.0
  %v212 = vsel %vm206, %v119, 0.0
  %v213 = vsel %vm206, %v121, 0.0
  %v214 = vsel %vm206, %v123, 0.0
  %v215 = vsel %vm206, %v125, 0.0
  %v216 = vsel %vm206, %v127, 0.0
  %v217 = vsel %vm206, %v129, 0.0
  %v218 = vsel %vm206, %v131, 0.0
  %v219 = vsel %vm206, %v133, 0.0
  %v220 = vsel %vm206, %v135, 0.0
  %v221 = vsel %vm206, %v137, 0.0
  %v222 = vsel %vm206, %v139, 0.0
  %v223 = vsel %vm206, %v141, 0.0
  %v224 = vsel %vm206, %v143, 0.0
  %v225 = vsel %vm206, %v145, 0.0
  %v226 = vsel %vm206, %v147, 0.0
  %v227 = vsel %vm206, %v149, 0.0
  %v228 = vsel %vm206, %v151, 0.0
  %v229 = vsel %vm206, %v153, 0.0
  %v230 = vsel %vm206, %v155, 0.0
  %v231 = vsel %vm206, %v157, 0.0
  %v232 = vsel %vm206, %v159, 0.0
  %v233 = vsel %vm206, %v161, 0.0
  %v234 = vsel %vm206, %v163, 0.0
  %v235 = vsel %vm206, %v165, 0.0
  %v236 = vsel %vm206, %v167, 0.0
  %v237 = vsel %vm206, %v169, 0.0
  %v238 = vsel %vm206, %v171, 0.0
  %v239 = vsel %vm206, %v173, 0.0
  %v240 = vsel %vm206, %v175, 0.0
  %v241 = vsel %vm206, %v177, 0.0
  %v242 = vsel %vm206, %v179, 0.0
  %v243 = vsel %vm206, %v181, 0.0
  %v244 = vsel %vm206, %v183, 0.0
  %v245 = vsel %vm206, %v185, 0.0
  %v246 = vsel %vm206, %v187, 0.0
  %v247 = vsel %vm206, %v189, 0.0
  %v248 = vsel %vm206, %v191, 0.0
  %v249 = vsel %vm206, %v193, 0.0
  %v250 = vsel %vm206, %v195, 0.0
  %v251 = vsel %vm206, %v197, 0.0
  %v252 = vsel %vm206, %v199, 0.0
  %v253 = vsel %vm206, %v201, 0.0
  %v254 = vsel %vm206, %v203, 0.0
  %v255 = vsel %vm206, %v205, 0.0
  %v256 = vadd.f32 %v57, %v207
  %v257 = vadd.f32 %v58, %v208
  %v258 = vadd.f32 %v59, %v209
  %v259 = vadd.f32 %v60, %v210
  %v260 = vadd.f32 %v61, %v211
  %v261 = vadd.f32 %v62, %v212
  %v262 = vadd.f32 %v63, %v213
  %v263 = vadd.f32 %v64, %v214
  %v264 = vadd.f32 %v65, %v215
  %v265 = vadd.f32 %v66, %v216
  %v266 = vadd.f32 %v67, %v217
  %v267 = vadd.f32 %v68, %v218
  %v268 = vadd.f32 %v69, %v219
  %v269 = vadd.f32 %v70, %v220
  %v270 = vadd.f32 %v71, %v221
  %v271 = vadd.f32 %v72, %v222
  %v272 = vadd.f32 %v73, %v223
  %v273 = vadd.f32 %v74, %v224
  %v274 = vadd.f32 %v75, %v225
  %v275 = vadd.f32 %v76, %v226
  %v276 = vadd.f32 %v77, %v227
  %v277 = vadd.f32 %v78, %v228
  %v278 = vadd.f32 %v79, %v229
  %v279 = vadd.f32 %v80, %v230
  %v280 = vadd.f32 %v81, %v231
  %v281 = vadd.f32 %v82, %v232
  %v282 = vadd.f32 %v83, %v233
  %v283 = vadd.f32 %v84, %v234
  %v284 = vadd.f32 %v85, %v235
  %v285 = vadd.f32 %v86, %v236
  %v286 = vadd.f32 %v87, %v237
  %v287 = vadd.f32 %v88, %v238
  %v288 = vadd.f32 %v89, %v239
  %v289 = vadd.f32 %v90, %v240
  %v290 = vadd.f32 %v91, %v241
  %v291 = vadd.f32 %v92, %v242
  %v292 = vadd.f32 %v93, %v243
  %v293 = vadd.f32 %v94, %v244
  %v294 = vadd.f32 %v95, %v245
  %v295 = vadd.f32 %v96, %v246
  %v296 = vadd.f32 %v97, %v247
  %v297 = vadd.f32 %v98, %v248
  %v298 = vadd.f32 %v99, %v249
  %v299 = vadd.f32 %v100, %v250
  %v300 = vadd.f32 %v101, %v251
  %v301 = vadd.f32 %v102, %v252
  %v302 = vadd.f32 %v103, %v253
  %v303 = vadd.f32 %v104, %v254
  %v304 = vadd.f32 %v105, %v255
  %305 = vrot.lane.b32.xlu0 %v57, 1
  %v306 = vpop.permute.xlu0 %305
  %307 = vrot.lane.b32.xlu0 %v58, 1
  %v308 = vpop.permute.xlu0 %307
  %309 = vrot.lane.b32.xlu0 %v59, 1
  %v310 = vpop.permute.xlu0 %309
  %311 = vrot.lane.b32.xlu0 %v60, 1
  %v312 = vpop.permute.xlu0 %311
  %313 = vrot.lane.b32.xlu0 %v61, 1
  %v314 = vpop.permute.xlu0 %313
  %315 = vrot.lane.b32.xlu0 %v62, 1
  %v316 = vpop.permute.xlu0 %315
  %317 = vrot.lane.b32.xlu0 %v63, 1
  %v318 = vpop.permute.xlu0 %317
  %319 = vrot.lane.b32.xlu0 %v64, 1
  %v320 = vpop.permute.xlu0 %319
  %321 = vrot.lane.b32.xlu0 %v65, 1
  %v322 = vpop.permute.xlu0 %321
  %323 = vrot.lane.b32.xlu0 %v66, 1
  %v324 = vpop.permute.xlu0 %323
  %325 = vrot.lane.b32.xlu0 %v67, 1
  %v326 = vpop.permute.xlu0 %325
  %327 = vrot.lane.b32.xlu0 %v68, 1
  %v328 = vpop.permute.xlu0 %327
  %329 = vrot.lane.b32.xlu0 %v69, 1
  %v330 = vpop.permute.xlu0 %329
  %331 = vrot.lane.b32.xlu0 %v70, 1
  %v332 = vpop.permute.xlu0 %331
  %333 = vrot.lane.b32.xlu0 %v71, 1
  %v334 = vpop.permute.xlu0 %333
  %335 = vrot.lane.b32.xlu0 %v72, 1
  %v336 = vpop.permute.xlu0 %335
  %337 = vrot.lane.b32.xlu0 %v73, 1
  %v338 = vpop.permute.xlu0 %337
  %339 = vrot.lane.b32.xlu0 %v74, 1
  %v340 = vpop.permute.xlu0 %339
  %341 = vrot.lane.b32.xlu0 %v75, 1
  %v342 = vpop.permute.xlu0 %341
  %343 = vrot.lane.b32.xlu0 %v76, 1
  %v344 = vpop.permute.xlu0 %343
  %345 = vrot.lane.b32.xlu0 %v77, 1
  %v346 = vpop.permute.xlu0 %345
  %347 = vrot.lane.b32.xlu0 %v78, 1
  %v348 = vpop.permute.xlu0 %347
  %349 = vrot.lane.b32.xlu0 %v79, 1
  %v350 = vpop.permute.xlu0 %349
  %351 = vrot.lane.b32.xlu0 %v80, 1
  %v352 = vpop.permute.xlu0 %351
  %353 = vrot.lane.b32.xlu0 %v81, 1
  %v354 = vpop.permute.xlu0 %353
  %355 = vrot.lane.b32.xlu0 %v82, 1
  %v356 = vpop.permute.xlu0 %355
  %357 = vrot.lane.b32.xlu0 %v83, 1
  %v358 = vpop.permute.xlu0 %357
  %359 = vrot.lane.b32.xlu0 %v84, 1
  %v360 = vpop.permute.xlu0 %359
  %361 = vrot.lane.b32.xlu0 %v85, 1
  %v362 = vpop.permute.xlu0 %361
  %363 = vrot.lane.b32.xlu0 %v86, 1
  %v364 = vpop.permute.xlu0 %363
  %365 = vrot.lane.b32.xlu0 %v87, 1
  %v366 = vpop.permute.xlu0 %365
  %367 = vrot.lane.b32.xlu0 %v88, 1
  %v368 = vpop.permute.xlu0 %367
  %369 = vrot.lane.b32.xlu0 %v89, 1
  %v370 = vpop.permute.xlu0 %369
  %371 = vrot.lane.b32.xlu0 %v90, 1
  %v372 = vpop.permute.xlu0 %371
  %373 = vrot.lane.b32.xlu0 %v91, 1
  %v374 = vpop.permute.xlu0 %373
  %375 = vrot.lane.b32.xlu0 %v92, 1
  %v376 = vpop.permute.xlu0 %375
  %377 = vrot.lane.b32.xlu0 %v93, 1
  %v378 = vpop.permute.xlu0 %377
  %379 = vrot.lane.b32.xlu0 %v94, 1
  %v380 = vpop.permute.xlu0 %379
  %381 = vrot.lane.b32.xlu0 %v95, 1
  %v382 = vpop.permute.xlu0 %381
  %383 = vrot.lane.b32.xlu0 %v96, 1
  %v384 = vpop.permute.xlu0 %383
  %385 = vrot.lane.b32.xlu0 %v97, 1
  %v386 = vpop.permute.xlu0 %385
  %387 = vrot.lane.b32.xlu0 %v98, 1
  %v388 = vpop.permute.xlu0 %387
  %389 = vrot.lane.b32.xlu0 %v99, 1
  %v390 = vpop.permute.xlu0 %389
  %391 = vrot.lane.b32.xlu0 %v100, 1
  %v392 = vpop.permute.xlu0 %391
  %393 = vrot.lane.b32.xlu0 %v101, 1
  %v394 = vpop.permute.xlu0 %393
  %395 = vrot.lane.b32.xlu0 %v102, 1
  %v396 = vpop.permute.xlu0 %395
  %397 = vrot.lane.b32.xlu0 %v103, 1
  %v398 = vpop.permute.xlu0 %397
  %399 = vrot.lane.b32.xlu0 %v104, 1
  %v400 = vpop.permute.xlu0 %399
  %401 = vrot.lane.b32.xlu0 %v105, 1
  %v402 = vpop.permute.xlu0 %401
  %vm403 = vcmp.ge.s32.totalorder %v107, 1
  %v404 = vsel %vm403, %v306, 0.0
  %v405 = vsel %vm403, %v308, 0.0
  %v406 = vsel %vm403, %v310, 0.0
  %v407 = vsel %vm403, %v312, 0.0
  %v408 = vsel %vm403, %v314, 0.0
  %v409 = vsel %vm403, %v316, 0.0
  %v410 = vsel %vm403, %v318, 0.0
  %v411 = vsel %vm403, %v320, 0.0
  %v412 = vsel %vm403, %v322, 0.0
  %v413 = vsel %vm403, %v324, 0.0
  %v414 = vsel %vm403, %v326, 0.0
  %v415 = vsel %vm403, %v328, 0.0
  %v416 = vsel %vm403, %v330, 0.0
  %v417 = vsel %vm403, %v332, 0.0
  %v418 = vsel %vm403, %v334, 0.0
  %v419 = vsel %vm403, %v336, 0.0
  %v420 = vsel %vm403, %v338, 0.0
  %v421 = vsel %vm403, %v340, 0.0
  %v422 = vsel %vm403, %v342, 0.0
  %v423 = vsel %vm403, %v344, 0.0
  %v424 = vsel %vm403, %v346, 0.0
  %v425 = vsel %vm403, %v348, 0.0
  %v426 = vsel %vm403, %v350, 0.0
  %v427 = vsel %vm403, %v352, 0.0
  %v428 = vsel %vm403, %v354, 0.0
  %v429 = vsel %vm403, %v356, 0.0
  %v430 = vsel %vm403, %v358, 0.0
  %v431 = vsel %vm403, %v360, 0.0
  %v432 = vsel %vm403, %v362, 0.0
  %v433 = vsel %vm403, %v364, 0.0
  %v434 = vsel %vm403, %v366, 0.0
  %v435 = vsel %vm403, %v368, 0.0
  %v436 = vsel %vm403, %v370, 0.0
  %v437 = vsel %vm403, %v372, 0.0
  %v438 = vsel %vm403, %v374, 0.0
  %v439 = vsel %vm403, %v376, 0.0
  %v440 = vsel %vm403, %v378, 0.0
  %v441 = vsel %vm403, %v380, 0.0
  %v442 = vsel %vm403, %v382, 0.0
  %v443 = vsel %vm403, %v384, 0.0
  %v444 = vsel %vm403, %v386, 0.0
  %v445 = vsel %vm403, %v388, 0.0
  %v446 = vsel %vm403, %v390, 0.0
  %v447 = vsel %vm403, %v392, 0.0
  %v448 = vsel %vm403, %v394, 0.0
  %v449 = vsel %vm403, %v396, 0.0
  %v450 = vsel %vm403, %v398, 0.0
  %v451 = vsel %vm403, %v400, 0.0
  %v452 = vsel %vm403, %v402, 0.0
  %v453 = vadd.f32 %v256, %v404
  %v454 = vadd.f32 %v257, %v405
  %v455 = vadd.f32 %v258, %v406
  %v456 = vadd.f32 %v259, %v407
  %v457 = vadd.f32 %v260, %v408
  %v458 = vadd.f32 %v261, %v409
  %v459 = vadd.f32 %v262, %v410
  %v460 = vadd.f32 %v263, %v411
  %v461 = vadd.f32 %v264, %v412
  %v462 = vadd.f32 %v265, %v413
  %v463 = vadd.f32 %v266, %v414
  %v464 = vadd.f32 %v267, %v415
  %v465 = vadd.f32 %v268, %v416
  %v466 = vadd.f32 %v269, %v417
  %v467 = vadd.f32 %v270, %v418
  %v468 = vadd.f32 %v271, %v419
  %v469 = vadd.f32 %v272, %v420
  %v470 = vadd.f32 %v273, %v421
  %v471 = vadd.f32 %v274, %v422
  %v472 = vadd.f32 %v275, %v423
  %v473 = vadd.f32 %v276, %v424
  %v474 = vadd.f32 %v277, %v425
  %v475 = vadd.f32 %v278, %v426
  %v476 = vadd.f32 %v279, %v427
  %v477 = vadd.f32 %v280, %v428
  %v478 = vadd.f32 %v281, %v429
  %v479 = vadd.f32 %v282, %v430
  %v480 = vadd.f32 %v283, %v431
  %v481 = vadd.f32 %v284, %v432
  %v482 = vadd.f32 %v285, %v433
  %v483 = vadd.f32 %v286, %v434
  %v484 = vadd.f32 %v287, %v435
  %v485 = vadd.f32 %v288, %v436
  %v486 = vadd.f32 %v289, %v437
  %v487 = vadd.f32 %v290, %v438
  %v488 = vadd.f32 %v291, %v439
  %v489 = vadd.f32 %v292, %v440
  %v490 = vadd.f32 %v293, %v441
  %v491 = vadd.f32 %v294, %v442
  %v492 = vadd.f32 %v295, %v443
  %v493 = vadd.f32 %v296, %v444
  %v494 = vadd.f32 %v297, %v445
  %v495 = vadd.f32 %v298, %v446
  %v496 = vadd.f32 %v299, %v447
  %v497 = vadd.f32 %v300, %v448
  %v498 = vadd.f32 %v301, %v449
  %v499 = vadd.f32 %v302, %v450
  %v500 = vadd.f32 %v303, %v451
  %v501 = vadd.f32 %v304, %v452
  %502 = vrot.lane.b32.xlu0 %v57, 126
  %v503 = vpop.permute.xlu0 %502
  %504 = vrot.lane.b32.xlu0 %v58, 126
  %v505 = vpop.permute.xlu0 %504
  %506 = vrot.lane.b32.xlu0 %v59, 126
  %v507 = vpop.permute.xlu0 %506
  %508 = vrot.lane.b32.xlu0 %v60, 126
  %v509 = vpop.permute.xlu0 %508
  %510 = vrot.lane.b32.xlu0 %v61, 126
  %v511 = vpop.permute.xlu0 %510
  %512 = vrot.lane.b32.xlu0 %v62, 126
  %v513 = vpop.permute.xlu0 %512
  %514 = vrot.lane.b32.xlu0 %v63, 126
  %v515 = vpop.permute.xlu0 %514
  %516 = vrot.lane.b32.xlu0 %v64, 126
  %v517 = vpop.permute.xlu0 %516
  %518 = vrot.lane.b32.xlu0 %v65, 126
  %v519 = vpop.permute.xlu0 %518
  %520 = vrot.lane.b32.xlu0 %v66, 126
  %v521 = vpop.permute.xlu0 %520
  %522 = vrot.lane.b32.xlu0 %v67, 126
  %v523 = vpop.permute.xlu0 %522
  %524 = vrot.lane.b32.xlu0 %v68, 126
  %v525 = vpop.permute.xlu0 %524
  %526 = vrot.lane.b32.xlu0 %v69, 126
  %v527 = vpop.permute.xlu0 %526
  %528 = vrot.lane.b32.xlu0 %v70, 126
  %v529 = vpop.permute.xlu0 %528
  %530 = vrot.lane.b32.xlu0 %v71, 126
  %v531 = vpop.permute.xlu0 %530
  %532 = vrot.lane.b32.xlu0 %v72, 126
  %v533 = vpop.permute.xlu0 %532
  %534 = vrot.lane.b32.xlu0 %v73, 126
  %v535 = vpop.permute.xlu0 %534
  %536 = vrot.lane.b32.xlu0 %v74, 126
  %v537 = vpop.permute.xlu0 %536
  %538 = vrot.lane.b32.xlu0 %v75, 126
  %v539 = vpop.permute.xlu0 %538
  %540 = vrot.lane.b32.xlu0 %v76, 126
  %v541 = vpop.permute.xlu0 %540
  %542 = vrot.lane.b32.xlu0 %v77, 126
  %v543 = vpop.permute.xlu0 %542
  %544 = vrot.lane.b32.xlu0 %v78, 126
  %v545 = vpop.permute.xlu0 %544
  %546 = vrot.lane.b32.xlu0 %v79, 126
  %v547 = vpop.permute.xlu0 %546
  %548 = vrot.lane.b32.xlu0 %v80, 126
  %v549 = vpop.permute.xlu0 %548
  %550 = vrot.lane.b32.xlu0 %v81, 126
  %v551 = vpop.permute.xlu0 %550
  %552 = vrot.lane.b32.xlu0 %v82, 126
  %v553 = vpop.permute.xlu0 %552
  %554 = vrot.lane.b32.xlu0 %v83, 126
  %v555 = vpop.permute.xlu0 %554
  %556 = vrot.lane.b32.xlu0 %v84, 126
  %v557 = vpop.permute.xlu0 %556
  %558 = vrot.lane.b32.xlu0 %v85, 126
  %v559 = vpop.permute.xlu0 %558
  %560 = vrot.lane.b32.xlu0 %v86, 126
  %v561 = vpop.permute.xlu0 %560
  %562 = vrot.lane.b32.xlu0 %v87, 126
  %v563 = vpop.permute.xlu0 %562
  %564 = vrot.lane.b32.xlu0 %v88, 126
  %v565 = vpop.permute.xlu0 %564
  %566 = vrot.lane.b32.xlu0 %v89, 126
  %v567 = vpop.permute.xlu0 %566
  %568 = vrot.lane.b32.xlu0 %v90, 126
  %v569 = vpop.permute.xlu0 %568
  %570 = vrot.lane.b32.xlu0 %v91, 126
  %v571 = vpop.permute.xlu0 %570
  %572 = vrot.lane.b32.xlu0 %v92, 126
  %v573 = vpop.permute.xlu0 %572
  %574 = vrot.lane.b32.xlu0 %v93, 126
  %v575 = vpop.permute.xlu0 %574
  %576 = vrot.lane.b32.xlu0 %v94, 126
  %v577 = vpop.permute.xlu0 %576
  %578 = vrot.lane.b32.xlu0 %v95, 126
  %v579 = vpop.permute.xlu0 %578
  %580 = vrot.lane.b32.xlu0 %v96, 126
  %v581 = vpop.permute.xlu0 %580
  %582 = vrot.lane.b32.xlu0 %v97, 126
  %v583 = vpop.permute.xlu0 %582
  %584 = vrot.lane.b32.xlu0 %v98, 126
  %v585 = vpop.permute.xlu0 %584
  %586 = vrot.lane.b32.xlu0 %v99, 126
  %v587 = vpop.permute.xlu0 %586
  %588 = vrot.lane.b32.xlu0 %v100, 126
  %v589 = vpop.permute.xlu0 %588
  %590 = vrot.lane.b32.xlu0 %v101, 126
  %v591 = vpop.permute.xlu0 %590
  %592 = vrot.lane.b32.xlu0 %v102, 126
  %v593 = vpop.permute.xlu0 %592
  %594 = vrot.lane.b32.xlu0 %v103, 126
  %v595 = vpop.permute.xlu0 %594
  %596 = vrot.lane.b32.xlu0 %v104, 126
  %v597 = vpop.permute.xlu0 %596
  %598 = vrot.lane.b32.xlu0 %v105, 126
  %v599 = vpop.permute.xlu0 %598
  %vm600 = vcmp.lt.s32.totalorder %v107, 126
  %v601 = vsel %vm600, %v503, 0.0
  %v602 = vsel %vm600, %v505, 0.0
  %v603 = vsel %vm600, %v507, 0.0
  %v604 = vsel %vm600, %v509, 0.0
  %v605 = vsel %vm600, %v511, 0.0
  %v606 = vsel %vm600, %v513, 0.0
  %v607 = vsel %vm600, %v515, 0.0
  %v608 = vsel %vm600, %v517, 0.0
  %v609 = vsel %vm600, %v519, 0.0
  %v610 = vsel %vm600, %v521, 0.0
  %v611 = vsel %vm600, %v523, 0.0
  %v612 = vsel %vm600, %v525, 0.0
  %v613 = vsel %vm600, %v527, 0.0
  %v614 = vsel %vm600, %v529, 0.0
  %v615 = vsel %vm600, %v531, 0.0
  %v616 = vsel %vm600, %v533, 0.0
  %v617 = vsel %vm600, %v535, 0.0
  %v618 = vsel %vm600, %v537, 0.0
  %v619 = vsel %vm600, %v539, 0.0
  %v620 = vsel %vm600, %v541, 0.0
  %v621 = vsel %vm600, %v543, 0.0
  %v622 = vsel %vm600, %v545, 0.0
  %v623 = vsel %vm600, %v547, 0.0
  %v624 = vsel %vm600, %v549, 0.0
  %v625 = vsel %vm600, %v551, 0.0
  %v626 = vsel %vm600, %v553, 0.0
  %v627 = vsel %vm600, %v555, 0.0
  %v628 = vsel %vm600, %v557, 0.0
  %v629 = vsel %vm600, %v559, 0.0
  %v630 = vsel %vm600, %v561, 0.0
  %v631 = vsel %vm600, %v563, 0.0
  %v632 = vsel %vm600, %v565, 0.0
  %v633 = vsel %vm600, %v567, 0.0
  %v634 = vsel %vm600, %v569, 0.0
  %v635 = vsel %vm600, %v571, 0.0
  %v636 = vsel %vm600, %v573, 0.0
  %v637 = vsel %vm600, %v575, 0.0
  %v638 = vsel %vm600, %v577, 0.0
  %v639 = vsel %vm600, %v579, 0.0
  %v640 = vsel %vm600, %v581, 0.0
  %v641 = vsel %vm600, %v583, 0.0
  %v642 = vsel %vm600, %v585, 0.0
  %v643 = vsel %vm600, %v587, 0.0
  %v644 = vsel %vm600, %v589, 0.0
  %v645 = vsel %vm600, %v591, 0.0
  %v646 = vsel %vm600, %v593, 0.0
  %v647 = vsel %vm600, %v595, 0.0
  %v648 = vsel %vm600, %v597, 0.0
  %v649 = vsel %vm600, %v599, 0.0
  %v650 = vadd.f32 %v453, %v601
  %v651 = vadd.f32 %v454, %v602
  %v652 = vadd.f32 %v455, %v603
  %v653 = vadd.f32 %v456, %v604
  %v654 = vadd.f32 %v457, %v605
  %v655 = vadd.f32 %v458, %v606
  %v656 = vadd.f32 %v459, %v607
  %v657 = vadd.f32 %v460, %v608
  %v658 = vadd.f32 %v461, %v609
  %v659 = vadd.f32 %v462, %v610
  %v660 = vadd.f32 %v463, %v611
  %v661 = vadd.f32 %v464, %v612
  %v662 = vadd.f32 %v465, %v613
  %v663 = vadd.f32 %v466, %v614
  %v664 = vadd.f32 %v467, %v615
  %v665 = vadd.f32 %v468, %v616
  %v666 = vadd.f32 %v469, %v617
  %v667 = vadd.f32 %v470, %v618
  %v668 = vadd.f32 %v471, %v619
  %v669 = vadd.f32 %v472, %v620
  %v670 = vadd.f32 %v473, %v621
  %v671 = vadd.f32 %v474, %v622
  %v672 = vadd.f32 %v475, %v623
  %v673 = vadd.f32 %v476, %v624
  %v674 = vadd.f32 %v477, %v625
  %v675 = vadd.f32 %v478, %v626
  %v676 = vadd.f32 %v479, %v627
  %v677 = vadd.f32 %v480, %v628
  %v678 = vadd.f32 %v481, %v629
  %v679 = vadd.f32 %v482, %v630
  %v680 = vadd.f32 %v483, %v631
  %v681 = vadd.f32 %v484, %v632
  %v682 = vadd.f32 %v485, %v633
  %v683 = vadd.f32 %v486, %v634
  %v684 = vadd.f32 %v487, %v635
  %v685 = vadd.f32 %v488, %v636
  %v686 = vadd.f32 %v489, %v637
  %v687 = vadd.f32 %v490, %v638
  %v688 = vadd.f32 %v491, %v639
  %v689 = vadd.f32 %v492, %v640
  %v690 = vadd.f32 %v493, %v641
  %v691 = vadd.f32 %v494, %v642
  %v692 = vadd.f32 %v495, %v643
  %v693 = vadd.f32 %v496, %v644
  %v694 = vadd.f32 %v497, %v645
  %v695 = vadd.f32 %v498, %v646
  %v696 = vadd.f32 %v499, %v647
  %v697 = vadd.f32 %v500, %v648
  %v698 = vadd.f32 %v501, %v649
  %699 = vrot.lane.b32.xlu0 %v57, 2
  %v700 = vpop.permute.xlu0 %699
  %701 = vrot.lane.b32.xlu0 %v58, 2
  %v702 = vpop.permute.xlu0 %701
  %703 = vrot.lane.b32.xlu0 %v59, 2
  %v704 = vpop.permute.xlu0 %703
  %705 = vrot.lane.b32.xlu0 %v60, 2
  %v706 = vpop.permute.xlu0 %705
  %707 = vrot.lane.b32.xlu0 %v61, 2
  %v708 = vpop.permute.xlu0 %707
  %709 = vrot.lane.b32.xlu0 %v62, 2
  %v710 = vpop.permute.xlu0 %709
  %711 = vrot.lane.b32.xlu0 %v63, 2
  %v712 = vpop.permute.xlu0 %711
  %713 = vrot.lane.b32.xlu0 %v64, 2
  %v714 = vpop.permute.xlu0 %713
  %715 = vrot.lane.b32.xlu0 %v65, 2
  %v716 = vpop.permute.xlu0 %715
  %717 = vrot.lane.b32.xlu0 %v66, 2
  %v718 = vpop.permute.xlu0 %717
  %719 = vrot.lane.b32.xlu0 %v67, 2
  %v720 = vpop.permute.xlu0 %719
  %721 = vrot.lane.b32.xlu0 %v68, 2
  %v722 = vpop.permute.xlu0 %721
  %723 = vrot.lane.b32.xlu0 %v69, 2
  %v724 = vpop.permute.xlu0 %723
  %725 = vrot.lane.b32.xlu0 %v70, 2
  %v726 = vpop.permute.xlu0 %725
  %727 = vrot.lane.b32.xlu0 %v71, 2
  %v728 = vpop.permute.xlu0 %727
  %729 = vrot.lane.b32.xlu0 %v72, 2
  %v730 = vpop.permute.xlu0 %729
  %731 = vrot.lane.b32.xlu0 %v73, 2
  %v732 = vpop.permute.xlu0 %731
  %733 = vrot.lane.b32.xlu0 %v74, 2
  %v734 = vpop.permute.xlu0 %733
  %735 = vrot.lane.b32.xlu0 %v75, 2
  %v736 = vpop.permute.xlu0 %735
  %737 = vrot.lane.b32.xlu0 %v76, 2
  %v738 = vpop.permute.xlu0 %737
  %739 = vrot.lane.b32.xlu0 %v77, 2
  %v740 = vpop.permute.xlu0 %739
  %741 = vrot.lane.b32.xlu0 %v78, 2
  %v742 = vpop.permute.xlu0 %741
  %743 = vrot.lane.b32.xlu0 %v79, 2
  %v744 = vpop.permute.xlu0 %743
  %745 = vrot.lane.b32.xlu0 %v80, 2
  %v746 = vpop.permute.xlu0 %745
  %747 = vrot.lane.b32.xlu0 %v81, 2
  %v748 = vpop.permute.xlu0 %747
  %749 = vrot.lane.b32.xlu0 %v82, 2
  %v750 = vpop.permute.xlu0 %749
  %751 = vrot.lane.b32.xlu0 %v83, 2
  %v752 = vpop.permute.xlu0 %751
  %753 = vrot.lane.b32.xlu0 %v84, 2
  %v754 = vpop.permute.xlu0 %753
  %755 = vrot.lane.b32.xlu0 %v85, 2
  %v756 = vpop.permute.xlu0 %755
  %757 = vrot.lane.b32.xlu0 %v86, 2
  %v758 = vpop.permute.xlu0 %757
  %759 = vrot.lane.b32.xlu0 %v87, 2
  %v760 = vpop.permute.xlu0 %759
  %761 = vrot.lane.b32.xlu0 %v88, 2
  %v762 = vpop.permute.xlu0 %761
  %763 = vrot.lane.b32.xlu0 %v89, 2
  %v764 = vpop.permute.xlu0 %763
  %765 = vrot.lane.b32.xlu0 %v90, 2
  %v766 = vpop.permute.xlu0 %765
  %767 = vrot.lane.b32.xlu0 %v91, 2
  %v768 = vpop.permute.xlu0 %767
  %769 = vrot.lane.b32.xlu0 %v92, 2
  %v770 = vpop.permute.xlu0 %769
  %771 = vrot.lane.b32.xlu0 %v93, 2
  %v772 = vpop.permute.xlu0 %771
  %773 = vrot.lane.b32.xlu0 %v94, 2
  %v774 = vpop.permute.xlu0 %773
  %775 = vrot.lane.b32.xlu0 %v95, 2
  %v776 = vpop.permute.xlu0 %775
  %777 = vrot.lane.b32.xlu0 %v96, 2
  %v778 = vpop.permute.xlu0 %777
  %779 = vrot.lane.b32.xlu0 %v97, 2
  %v780 = vpop.permute.xlu0 %779
  %781 = vrot.lane.b32.xlu0 %v98, 2
  %v782 = vpop.permute.xlu0 %781
  %783 = vrot.lane.b32.xlu0 %v99, 2
  %v784 = vpop.permute.xlu0 %783
  %785 = vrot.lane.b32.xlu0 %v100, 2
  %v786 = vpop.permute.xlu0 %785
  %787 = vrot.lane.b32.xlu0 %v101, 2
  %v788 = vpop.permute.xlu0 %787
  %789 = vrot.lane.b32.xlu0 %v102, 2
  %v790 = vpop.permute.xlu0 %789
  %791 = vrot.lane.b32.xlu0 %v103, 2
  %v792 = vpop.permute.xlu0 %791
  %793 = vrot.lane.b32.xlu0 %v104, 2
  %v794 = vpop.permute.xlu0 %793
  %795 = vrot.lane.b32.xlu0 %v105, 2
  %v796 = vpop.permute.xlu0 %795
  %vm797 = vcmp.ge.s32.totalorder %v107, 2
  %v798 = vsel %vm797, %v700, 0.0
  %v799 = vsel %vm797, %v702, 0.0
  %v800 = vsel %vm797, %v704, 0.0
  %v801 = vsel %vm797, %v706, 0.0
  %v802 = vsel %vm797, %v708, 0.0
  %v803 = vsel %vm797, %v710, 0.0
  %v804 = vsel %vm797, %v712, 0.0
  %v805 = vsel %vm797, %v714, 0.0
  %v806 = vsel %vm797, %v716, 0.0
  %v807 = vsel %vm797, %v718, 0.0
  %v808 = vsel %vm797, %v720, 0.0
  %v809 = vsel %vm797, %v722, 0.0
  %v810 = vsel %vm797, %v724, 0.0
  %v811 = vsel %vm797, %v726, 0.0
  %v812 = vsel %vm797, %v728, 0.0
  %v813 = vsel %vm797, %v730, 0.0
  %v814 = vsel %vm797, %v732, 0.0
  %v815 = vsel %vm797, %v734, 0.0
  %v816 = vsel %vm797, %v736, 0.0
  %v817 = vsel %vm797, %v738, 0.0
  %v818 = vsel %vm797, %v740, 0.0
  %v819 = vsel %vm797, %v742, 0.0
  %v820 = vsel %vm797, %v744, 0.0
  %v821 = vsel %vm797, %v746, 0.0
  %v822 = vsel %vm797, %v748, 0.0
  %v823 = vsel %vm797, %v750, 0.0
  %v824 = vsel %vm797, %v752, 0.0
  %v825 = vsel %vm797, %v754, 0.0
  %v826 = vsel %vm797, %v756, 0.0
  %v827 = vsel %vm797, %v758, 0.0
  %v828 = vsel %vm797, %v760, 0.0
  %v829 = vsel %vm797, %v762, 0.0
  %v830 = vsel %vm797, %v764, 0.0
  %v831 = vsel %vm797, %v766, 0.0
  %v832 = vsel %vm797, %v768, 0.0
  %v833 = vsel %vm797, %v770, 0.0
  %v834 = vsel %vm797, %v772, 0.0
  %v835 = vsel %vm797, %v774, 0.0
  %v836 = vsel %vm797, %v776, 0.0
  %v837 = vsel %vm797, %v778, 0.0
  %v838 = vsel %vm797, %v780, 0.0
  %v839 = vsel %vm797, %v782, 0.0
  %v840 = vsel %vm797, %v784, 0.0
  %v841 = vsel %vm797, %v786, 0.0
  %v842 = vsel %vm797, %v788, 0.0
  %v843 = vsel %vm797, %v790, 0.0
  %v844 = vsel %vm797, %v792, 0.0
  %v845 = vsel %vm797, %v794, 0.0
  %v846 = vsel %vm797, %v796, 0.0
  %v847 = vadd.f32 %v650, %v798
  %v848 = vadd.f32 %v651, %v799
  %v849 = vadd.f32 %v652, %v800
  %v850 = vadd.f32 %v653, %v801
  %v851 = vadd.f32 %v654, %v802
  %v852 = vadd.f32 %v655, %v803
  %v853 = vadd.f32 %v656, %v804
  %v854 = vadd.f32 %v657, %v805
  %v855 = vadd.f32 %v658, %v806
  %v856 = vadd.f32 %v659, %v807
  %v857 = vadd.f32 %v660, %v808
  %v858 = vadd.f32 %v661, %v809
  %v859 = vadd.f32 %v662, %v810
  %v860 = vadd.f32 %v663, %v811
  %v861 = vadd.f32 %v664, %v812
  %v862 = vadd.f32 %v665, %v813
  %v863 = vadd.f32 %v666, %v814
  %v864 = vadd.f32 %v667, %v815
  %v865 = vadd.f32 %v668, %v816
  %v866 = vadd.f32 %v669, %v817
  %v867 = vadd.f32 %v670, %v818
  %v868 = vadd.f32 %v671, %v819
  %v869 = vadd.f32 %v672, %v820
  %v870 = vadd.f32 %v673, %v821
  %v871 = vadd.f32 %v674, %v822
  %v872 = vadd.f32 %v675, %v823
  %v873 = vadd.f32 %v676, %v824
  %v874 = vadd.f32 %v677, %v825
  %v875 = vadd.f32 %v678, %v826
  %v876 = vadd.f32 %v679, %v827
  %v877 = vadd.f32 %v680, %v828
  %v878 = vadd.f32 %v681, %v829
  %v879 = vadd.f32 %v682, %v830
  %v880 = vadd.f32 %v683, %v831
  %v881 = vadd.f32 %v684, %v832
  %v882 = vadd.f32 %v685, %v833
  %v883 = vadd.f32 %v686, %v834
  %v884 = vadd.f32 %v687, %v835
  %v885 = vadd.f32 %v688, %v836
  %v886 = vadd.f32 %v689, %v837
  %v887 = vadd.f32 %v690, %v838
  %v888 = vadd.f32 %v691, %v839
  %v889 = vadd.f32 %v692, %v840
  %v890 = vadd.f32 %v693, %v841
  %v891 = vadd.f32 %v694, %v842
  %v892 = vadd.f32 %v695, %v843
  %v893 = vadd.f32 %v696, %v844
  %v894 = vadd.f32 %v697, %v845
  %v895 = vadd.f32 %v698, %v846
  %v896 = vmul.f32 %v847, 2e-05
  %v897 = vmul.f32 %v848, 2e-05
  %v898 = vmul.f32 %v849, 2e-05
  %v899 = vmul.f32 %v850, 2e-05
  %v900 = vmul.f32 %v851, 2e-05
  %v901 = vmul.f32 %v852, 2e-05
  %v902 = vmul.f32 %v853, 2e-05
  %v903 = vmul.f32 %v854, 2e-05
  %v904 = vmul.f32 %v855, 2e-05
  %v905 = vmul.f32 %v856, 2e-05
  %v906 = vmul.f32 %v857, 2e-05
  %v907 = vmul.f32 %v858, 2e-05
  %v908 = vmul.f32 %v859, 2e-05
  %v909 = vmul.f32 %v860, 2e-05
  %v910 = vmul.f32 %v861, 2e-05
  %v911 = vmul.f32 %v862, 2e-05
  %v912 = vmul.f32 %v863, 2e-05
  %v913 = vmul.f32 %v864, 2e-05
  %v914 = vmul.f32 %v865, 2e-05
  %v915 = vmul.f32 %v866, 2e-05
  %v916 = vmul.f32 %v867, 2e-05
  %v917 = vmul.f32 %v868, 2e-05
  %v918 = vmul.f32 %v869, 2e-05
  %v919 = vmul.f32 %v870, 2e-05
  %v920 = vmul.f32 %v871, 2e-05
  %v921 = vmul.f32 %v872, 2e-05
  %v922 = vmul.f32 %v873, 2e-05
  %v923 = vmul.f32 %v874, 2e-05
  %v924 = vmul.f32 %v875, 2e-05
  %v925 = vmul.f32 %v876, 2e-05
  %v926 = vmul.f32 %v877, 2e-05
  %v927 = vmul.f32 %v878, 2e-05
  %v928 = vmul.f32 %v879, 2e-05
  %v929 = vmul.f32 %v880, 2e-05
  %v930 = vmul.f32 %v881, 2e-05
  %v931 = vmul.f32 %v882, 2e-05
  %v932 = vmul.f32 %v883, 2e-05
  %v933 = vmul.f32 %v884, 2e-05
  %v934 = vmul.f32 %v885, 2e-05
  %v935 = vmul.f32 %v886, 2e-05
  %v936 = vmul.f32 %v887, 2e-05
  %v937 = vmul.f32 %v888, 2e-05
  %v938 = vmul.f32 %v889, 2e-05
  %v939 = vmul.f32 %v890, 2e-05
  %v940 = vmul.f32 %v891, 2e-05
  %v941 = vmul.f32 %v892, 2e-05
  %v942 = vmul.f32 %v893, 2e-05
  %v943 = vmul.f32 %v894, 2e-05
  %v944 = vmul.f32 %v895, 2e-05
  %v945 = vadd.f32 %v896, 1.0
  %v946 = vadd.f32 %v897, 1.0
  %v947 = vadd.f32 %v898, 1.0
  %v948 = vadd.f32 %v899, 1.0
  %v949 = vadd.f32 %v900, 1.0
  %v950 = vadd.f32 %v901, 1.0
  %v951 = vadd.f32 %v902, 1.0
  %v952 = vadd.f32 %v903, 1.0
  %v953 = vadd.f32 %v904, 1.0
  %v954 = vadd.f32 %v905, 1.0
  %v955 = vadd.f32 %v906, 1.0
  %v956 = vadd.f32 %v907, 1.0
  %v957 = vadd.f32 %v908, 1.0
  %v958 = vadd.f32 %v909, 1.0
  %v959 = vadd.f32 %v910, 1.0
  %v960 = vadd.f32 %v911, 1.0
  %v961 = vadd.f32 %v912, 1.0
  %v962 = vadd.f32 %v913, 1.0
  %v963 = vadd.f32 %v914, 1.0
  %v964 = vadd.f32 %v915, 1.0
  %v965 = vadd.f32 %v916, 1.0
  %v966 = vadd.f32 %v917, 1.0
  %v967 = vadd.f32 %v918, 1.0
  %v968 = vadd.f32 %v919, 1.0
  %v969 = vadd.f32 %v920, 1.0
  %v970 = vadd.f32 %v921, 1.0
  %v971 = vadd.f32 %v922, 1.0
  %v972 = vadd.f32 %v923, 1.0
  %v973 = vadd.f32 %v924, 1.0
  %v974 = vadd.f32 %v925, 1.0
  %v975 = vadd.f32 %v926, 1.0
  %v976 = vadd.f32 %v927, 1.0
  %v977 = vadd.f32 %v928, 1.0
  %v978 = vadd.f32 %v929, 1.0
  %v979 = vadd.f32 %v930, 1.0
  %v980 = vadd.f32 %v931, 1.0
  %v981 = vadd.f32 %v932, 1.0
  %v982 = vadd.f32 %v933, 1.0
  %v983 = vadd.f32 %v934, 1.0
  %v984 = vadd.f32 %v935, 1.0
  %v985 = vadd.f32 %v936, 1.0
  %v986 = vadd.f32 %v937, 1.0
  %v987 = vadd.f32 %v938, 1.0
  %v988 = vadd.f32 %v939, 1.0
  %v989 = vadd.f32 %v940, 1.0
  %v990 = vadd.f32 %v941, 1.0
  %v991 = vadd.f32 %v942, 1.0
  %v992 = vadd.f32 %v943, 1.0
  %v993 = vadd.f32 %v944, 1.0
  %v994 = vrsqrt.pop %v945
  %v995 = vrsqrt.pop %v946
  %v996 = vrsqrt.pop %v947
  %v997 = vrsqrt.pop %v948
  %v998 = vrsqrt.pop %v949
  %v999 = vrsqrt.pop %v950
  %v1000 = vrsqrt.pop %v951
  %v1001 = vrsqrt.pop %v952
  %v1002 = vrsqrt.pop %v953
  %v1003 = vrsqrt.pop %v954
  %v1004 = vrsqrt.pop %v955
  %v1005 = vrsqrt.pop %v956
  %v1006 = vrsqrt.pop %v957
  %v1007 = vrsqrt.pop %v958
  %v1008 = vrsqrt.pop %v959
  %v1009 = vrsqrt.pop %v960
  %v1010 = vrsqrt.pop %v961
  %v1011 = vrsqrt.pop %v962
  %v1012 = vrsqrt.pop %v963
  %v1013 = vrsqrt.pop %v964
  %v1014 = vrsqrt.pop %v965
  %v1015 = vrsqrt.pop %v966
  %v1016 = vrsqrt.pop %v967
  %v1017 = vrsqrt.pop %v968
  %v1018 = vrsqrt.pop %v969
  %v1019 = vrsqrt.pop %v970
  %v1020 = vrsqrt.pop %v971
  %v1021 = vrsqrt.pop %v972
  %v1022 = vrsqrt.pop %v973
  %v1023 = vrsqrt.pop %v974
  %v1024 = vrsqrt.pop %v975
  %v1025 = vrsqrt.pop %v976
  %v1026 = vrsqrt.pop %v977
  %v1027 = vrsqrt.pop %v978
  %v1028 = vrsqrt.pop %v979
  %v1029 = vrsqrt.pop %v980
  %v1030 = vrsqrt.pop %v981
  %v1031 = vrsqrt.pop %v982
  %v1032 = vrsqrt.pop %v983
  %v1033 = vrsqrt.pop %v984
  %v1034 = vrsqrt.pop %v985
  %v1035 = vrsqrt.pop %v986
  %v1036 = vrsqrt.pop %v987
  %v1037 = vrsqrt.pop %v988
  %v1038 = vrsqrt.pop %v989
  %v1039 = vrsqrt.pop %v990
  %v1040 = vrsqrt.pop %v991
  %v1041 = vrsqrt.pop %v992
  %v1042 = vrsqrt.pop %v993
  %v1043 = vrsqrt.pop %v994
  %v1044 = vmul.f32 %v994, %v1043
  %vm1045 = vcmp.eq.f32.partialorder %v994, inf
  %v1046 = vsel %vm1045, %v994, %v1044
  %vm1047 = vcmp.eq.f32.partialorder %v994, 0.0
  %v1048 = vand.u32 %v994, 2147483648
  %v1049 = vsel %vm1047, %v1048, %v1046
  %v1050 = vrsqrt.pop %v995
  %v1051 = vmul.f32 %v995, %v1050
  %vm1052 = vcmp.eq.f32.partialorder %v995, inf
  %v1053 = vsel %vm1052, %v995, %v1051
  %vm1054 = vcmp.eq.f32.partialorder %v995, 0.0
  %v1055 = vand.u32 %v995, 2147483648
  %v1056 = vsel %vm1054, %v1055, %v1053
  %v1057 = vrsqrt.pop %v996
  %v1058 = vmul.f32 %v996, %v1057
  %vm1059 = vcmp.eq.f32.partialorder %v996, inf
  %v1060 = vsel %vm1059, %v996, %v1058
  %vm1061 = vcmp.eq.f32.partialorder %v996, 0.0
  %v1062 = vand.u32 %v996, 2147483648
  %v1063 = vsel %vm1061, %v1062, %v1060
  %v1064 = vrsqrt.pop %v997
  %v1065 = vmul.f32 %v997, %v1064
  %vm1066 = vcmp.eq.f32.partialorder %v997, inf
  %v1067 = vsel %vm1066, %v997, %v1065
  %vm1068 = vcmp.eq.f32.partialorder %v997, 0.0
  %v1069 = vand.u32 %v997, 2147483648
  %v1070 = vsel %vm1068, %v1069, %v1067
  %v1071 = vrsqrt.pop %v998
  %v1072 = vmul.f32 %v998, %v1071
  %vm1073 = vcmp.eq.f32.partialorder %v998, inf
  %v1074 = vsel %vm1073, %v998, %v1072
  %vm1075 = vcmp.eq.f32.partialorder %v998, 0.0
  %v1076 = vand.u32 %v998, 2147483648
  %v1077 = vsel %vm1075, %v1076, %v1074
  %v1078 = vrsqrt.pop %v999
  %v1079 = vmul.f32 %v999, %v1078
  %vm1080 = vcmp.eq.f32.partialorder %v999, inf
  %v1081 = vsel %vm1080, %v999, %v1079
  %vm1082 = vcmp.eq.f32.partialorder %v999, 0.0
  %v1083 = vand.u32 %v999, 2147483648
  %v1084 = vsel %vm1082, %v1083, %v1081
  %v1085 = vrsqrt.pop %v1000
  %v1086 = vmul.f32 %v1000, %v1085
  %vm1087 = vcmp.eq.f32.partialorder %v1000, inf
  %v1088 = vsel %vm1087, %v1000, %v1086
  %vm1089 = vcmp.eq.f32.partialorder %v1000, 0.0
  %v1090 = vand.u32 %v1000, 2147483648
  %v1091 = vsel %vm1089, %v1090, %v1088
  %v1092 = vrsqrt.pop %v1001
  %v1093 = vmul.f32 %v1001, %v1092
  %vm1094 = vcmp.eq.f32.partialorder %v1001, inf
  %v1095 = vsel %vm1094, %v1001, %v1093
  %vm1096 = vcmp.eq.f32.partialorder %v1001, 0.0
  %v1097 = vand.u32 %v1001, 2147483648
  %v1098 = vsel %vm1096, %v1097, %v1095
  %v1099 = vrsqrt.pop %v1002
  %v1100 = vmul.f32 %v1002, %v1099
  %vm1101 = vcmp.eq.f32.partialorder %v1002, inf
  %v1102 = vsel %vm1101, %v1002, %v1100
  %vm1103 = vcmp.eq.f32.partialorder %v1002, 0.0
  %v1104 = vand.u32 %v1002, 2147483648
  %v1105 = vsel %vm1103, %v1104, %v1102
  %v1106 = vrsqrt.pop %v1003
  %v1107 = vmul.f32 %v1003, %v1106
  %vm1108 = vcmp.eq.f32.partialorder %v1003, inf
  %v1109 = vsel %vm1108, %v1003, %v1107
  %vm1110 = vcmp.eq.f32.partialorder %v1003, 0.0
  %v1111 = vand.u32 %v1003, 2147483648
  %v1112 = vsel %vm1110, %v1111, %v1109
  %v1113 = vrsqrt.pop %v1004
  %v1114 = vmul.f32 %v1004, %v1113
  %vm1115 = vcmp.eq.f32.partialorder %v1004, inf
  %v1116 = vsel %vm1115, %v1004, %v1114
  %vm1117 = vcmp.eq.f32.partialorder %v1004, 0.0
  %v1118 = vand.u32 %v1004, 2147483648
  %v1119 = vsel %vm1117, %v1118, %v1116
  %v1120 = vrsqrt.pop %v1005
  %v1121 = vmul.f32 %v1005, %v1120
  %vm1122 = vcmp.eq.f32.partialorder %v1005, inf
  %v1123 = vsel %vm1122, %v1005, %v1121
  %vm1124 = vcmp.eq.f32.partialorder %v1005, 0.0
  %v1125 = vand.u32 %v1005, 2147483648
  %v1126 = vsel %vm1124, %v1125, %v1123
  %v1127 = vrsqrt.pop %v1006
  %v1128 = vmul.f32 %v1006, %v1127
  %vm1129 = vcmp.eq.f32.partialorder %v1006, inf
  %v1130 = vsel %vm1129, %v1006, %v1128
  %vm1131 = vcmp.eq.f32.partialorder %v1006, 0.0
  %v1132 = vand.u32 %v1006, 2147483648
  %v1133 = vsel %vm1131, %v1132, %v1130
  %v1134 = vrsqrt.pop %v1007
  %v1135 = vmul.f32 %v1007, %v1134
  %vm1136 = vcmp.eq.f32.partialorder %v1007, inf
  %v1137 = vsel %vm1136, %v1007, %v1135
  %vm1138 = vcmp.eq.f32.partialorder %v1007, 0.0
  %v1139 = vand.u32 %v1007, 2147483648
  %v1140 = vsel %vm1138, %v1139, %v1137
  %v1141 = vrsqrt.pop %v1008
  %v1142 = vmul.f32 %v1008, %v1141
  %vm1143 = vcmp.eq.f32.partialorder %v1008, inf
  %v1144 = vsel %vm1143, %v1008, %v1142
  %vm1145 = vcmp.eq.f32.partialorder %v1008, 0.0
  %v1146 = vand.u32 %v1008, 2147483648
  %v1147 = vsel %vm1145, %v1146, %v1144
  %v1148 = vrsqrt.pop %v1009
  %v1149 = vmul.f32 %v1009, %v1148
  %vm1150 = vcmp.eq.f32.partialorder %v1009, inf
  %v1151 = vsel %vm1150, %v1009, %v1149
  %vm1152 = vcmp.eq.f32.partialorder %v1009, 0.0
  %v1153 = vand.u32 %v1009, 2147483648
  %v1154 = vsel %vm1152, %v1153, %v1151
  %v1155 = vrsqrt.pop %v1010
  %v1156 = vmul.f32 %v1010, %v1155
  %vm1157 = vcmp.eq.f32.partialorder %v1010, inf
  %v1158 = vsel %vm1157, %v1010, %v1156
  %vm1159 = vcmp.eq.f32.partialorder %v1010, 0.0
  %v1160 = vand.u32 %v1010, 2147483648
  %v1161 = vsel %vm1159, %v1160, %v1158
  %v1162 = vrsqrt.pop %v1011
  %v1163 = vmul.f32 %v1011, %v1162
  %vm1164 = vcmp.eq.f32.partialorder %v1011, inf
  %v1165 = vsel %vm1164, %v1011, %v1163
  %vm1166 = vcmp.eq.f32.partialorder %v1011, 0.0
  %v1167 = vand.u32 %v1011, 2147483648
  %v1168 = vsel %vm1166, %v1167, %v1165
  %v1169 = vrsqrt.pop %v1012
  %v1170 = vmul.f32 %v1012, %v1169
  %vm1171 = vcmp.eq.f32.partialorder %v1012, inf
  %v1172 = vsel %vm1171, %v1012, %v1170
  %vm1173 = vcmp.eq.f32.partialorder %v1012, 0.0
  %v1174 = vand.u32 %v1012, 2147483648
  %v1175 = vsel %vm1173, %v1174, %v1172
  %v1176 = vrsqrt.pop %v1013
  %v1177 = vmul.f32 %v1013, %v1176
  %vm1178 = vcmp.eq.f32.partialorder %v1013, inf
  %v1179 = vsel %vm1178, %v1013, %v1177
  %vm1180 = vcmp.eq.f32.partialorder %v1013, 0.0
  %v1181 = vand.u32 %v1013, 2147483648
  %v1182 = vsel %vm1180, %v1181, %v1179
  %v1183 = vrsqrt.pop %v1014
  %v1184 = vmul.f32 %v1014, %v1183
  %vm1185 = vcmp.eq.f32.partialorder %v1014, inf
  %v1186 = vsel %vm1185, %v1014, %v1184
  %vm1187 = vcmp.eq.f32.partialorder %v1014, 0.0
  %v1188 = vand.u32 %v1014, 2147483648
  %v1189 = vsel %vm1187, %v1188, %v1186
  %v1190 = vrsqrt.pop %v1015
  %v1191 = vmul.f32 %v1015, %v1190
  %vm1192 = vcmp.eq.f32.partialorder %v1015, inf
  %v1193 = vsel %vm1192, %v1015, %v1191
  %vm1194 = vcmp.eq.f32.partialorder %v1015, 0.0
  %v1195 = vand.u32 %v1015, 2147483648
  %v1196 = vsel %vm1194, %v1195, %v1193
  %v1197 = vrsqrt.pop %v1016
  %v1198 = vmul.f32 %v1016, %v1197
  %vm1199 = vcmp.eq.f32.partialorder %v1016, inf
  %v1200 = vsel %vm1199, %v1016, %v1198
  %vm1201 = vcmp.eq.f32.partialorder %v1016, 0.0
  %v1202 = vand.u32 %v1016, 2147483648
  %v1203 = vsel %vm1201, %v1202, %v1200
  %v1204 = vrsqrt.pop %v1017
  %v1205 = vmul.f32 %v1017, %v1204
  %vm1206 = vcmp.eq.f32.partialorder %v1017, inf
  %v1207 = vsel %vm1206, %v1017, %v1205
  %vm1208 = vcmp.eq.f32.partialorder %v1017, 0.0
  %v1209 = vand.u32 %v1017, 2147483648
  %v1210 = vsel %vm1208, %v1209, %v1207
  %v1211 = vrsqrt.pop %v1018
  %v1212 = vmul.f32 %v1018, %v1211
  %vm1213 = vcmp.eq.f32.partialorder %v1018, inf
  %v1214 = vsel %vm1213, %v1018, %v1212
  %vm1215 = vcmp.eq.f32.partialorder %v1018, 0.0
  %v1216 = vand.u32 %v1018, 2147483648
  %v1217 = vsel %vm1215, %v1216, %v1214
  %v1218 = vrsqrt.pop %v1019
  %v1219 = vmul.f32 %v1019, %v1218
  %vm1220 = vcmp.eq.f32.partialorder %v1019, inf
  %v1221 = vsel %vm1220, %v1019, %v1219
  %vm1222 = vcmp.eq.f32.partialorder %v1019, 0.0
  %v1223 = vand.u32 %v1019, 2147483648
  %v1224 = vsel %vm1222, %v1223, %v1221
  %v1225 = vrsqrt.pop %v1020
  %v1226 = vmul.f32 %v1020, %v1225
  %vm1227 = vcmp.eq.f32.partialorder %v1020, inf
  %v1228 = vsel %vm1227, %v1020, %v1226
  %vm1229 = vcmp.eq.f32.partialorder %v1020, 0.0
  %v1230 = vand.u32 %v1020, 2147483648
  %v1231 = vsel %vm1229, %v1230, %v1228
  %v1232 = vrsqrt.pop %v1021
  %v1233 = vmul.f32 %v1021, %v1232
  %vm1234 = vcmp.eq.f32.partialorder %v1021, inf
  %v1235 = vsel %vm1234, %v1021, %v1233
  %vm1236 = vcmp.eq.f32.partialorder %v1021, 0.0
  %v1237 = vand.u32 %v1021, 2147483648
  %v1238 = vsel %vm1236, %v1237, %v1235
  %v1239 = vrsqrt.pop %v1022
  %v1240 = vmul.f32 %v1022, %v1239
  %vm1241 = vcmp.eq.f32.partialorder %v1022, inf
  %v1242 = vsel %vm1241, %v1022, %v1240
  %vm1243 = vcmp.eq.f32.partialorder %v1022, 0.0
  %v1244 = vand.u32 %v1022, 2147483648
  %v1245 = vsel %vm1243, %v1244, %v1242
  %v1246 = vrsqrt.pop %v1023
  %v1247 = vmul.f32 %v1023, %v1246
  %vm1248 = vcmp.eq.f32.partialorder %v1023, inf
  %v1249 = vsel %vm1248, %v1023, %v1247
  %vm1250 = vcmp.eq.f32.partialorder %v1023, 0.0
  %v1251 = vand.u32 %v1023, 2147483648
  %v1252 = vsel %vm1250, %v1251, %v1249
  %v1253 = vrsqrt.pop %v1024
  %v1254 = vmul.f32 %v1024, %v1253
  %vm1255 = vcmp.eq.f32.partialorder %v1024, inf
  %v1256 = vsel %vm1255, %v1024, %v1254
  %vm1257 = vcmp.eq.f32.partialorder %v1024, 0.0
  %v1258 = vand.u32 %v1024, 2147483648
  %v1259 = vsel %vm1257, %v1258, %v1256
  %v1260 = vrsqrt.pop %v1025
  %v1261 = vmul.f32 %v1025, %v1260
  %vm1262 = vcmp.eq.f32.partialorder %v1025, inf
  %v1263 = vsel %vm1262, %v1025, %v1261
  %vm1264 = vcmp.eq.f32.partialorder %v1025, 0.0
  %v1265 = vand.u32 %v1025, 2147483648
  %v1266 = vsel %vm1264, %v1265, %v1263
  %v1267 = vrsqrt.pop %v1026
  %v1268 = vmul.f32 %v1026, %v1267
  %vm1269 = vcmp.eq.f32.partialorder %v1026, inf
  %v1270 = vsel %vm1269, %v1026, %v1268
  %vm1271 = vcmp.eq.f32.partialorder %v1026, 0.0
  %v1272 = vand.u32 %v1026, 2147483648
  %v1273 = vsel %vm1271, %v1272, %v1270
  %v1274 = vrsqrt.pop %v1027
  %v1275 = vmul.f32 %v1027, %v1274
  %vm1276 = vcmp.eq.f32.partialorder %v1027, inf
  %v1277 = vsel %vm1276, %v1027, %v1275
  %vm1278 = vcmp.eq.f32.partialorder %v1027, 0.0
  %v1279 = vand.u32 %v1027, 2147483648
  %v1280 = vsel %vm1278, %v1279, %v1277
  %v1281 = vrsqrt.pop %v1028
  %v1282 = vmul.f32 %v1028, %v1281
  %vm1283 = vcmp.eq.f32.partialorder %v1028, inf
  %v1284 = vsel %vm1283, %v1028, %v1282
  %vm1285 = vcmp.eq.f32.partialorder %v1028, 0.0
  %v1286 = vand.u32 %v1028, 2147483648
  %v1287 = vsel %vm1285, %v1286, %v1284
  %v1288 = vrsqrt.pop %v1029
  %v1289 = vmul.f32 %v1029, %v1288
  %vm1290 = vcmp.eq.f32.partialorder %v1029, inf
  %v1291 = vsel %vm1290, %v1029, %v1289
  %vm1292 = vcmp.eq.f32.partialorder %v1029, 0.0
  %v1293 = vand.u32 %v1029, 2147483648
  %v1294 = vsel %vm1292, %v1293, %v1291
  %v1295 = vrsqrt.pop %v1030
  %v1296 = vmul.f32 %v1030, %v1295
  %vm1297 = vcmp.eq.f32.partialorder %v1030, inf
  %v1298 = vsel %vm1297, %v1030, %v1296
  %vm1299 = vcmp.eq.f32.partialorder %v1030, 0.0
  %v1300 = vand.u32 %v1030, 2147483648
  %v1301 = vsel %vm1299, %v1300, %v1298
  %v1302 = vrsqrt.pop %v1031
  %v1303 = vmul.f32 %v1031, %v1302
  %vm1304 = vcmp.eq.f32.partialorder %v1031, inf
  %v1305 = vsel %vm1304, %v1031, %v1303
  %vm1306 = vcmp.eq.f32.partialorder %v1031, 0.0
  %v1307 = vand.u32 %v1031, 2147483648
  %v1308 = vsel %vm1306, %v1307, %v1305
  %v1309 = vrsqrt.pop %v1032
  %v1310 = vmul.f32 %v1032, %v1309
  %vm1311 = vcmp.eq.f32.partialorder %v1032, inf
  %v1312 = vsel %vm1311, %v1032, %v1310
  %vm1313 = vcmp.eq.f32.partialorder %v1032, 0.0
  %v1314 = vand.u32 %v1032, 2147483648
  %v1315 = vsel %vm1313, %v1314, %v1312
  %v1316 = vrsqrt.pop %v1033
  %v1317 = vmul.f32 %v1033, %v1316
  %vm1318 = vcmp.eq.f32.partialorder %v1033, inf
  %v1319 = vsel %vm1318, %v1033, %v1317
  %vm1320 = vcmp.eq.f32.partialorder %v1033, 0.0
  %v1321 = vand.u32 %v1033, 2147483648
  %v1322 = vsel %vm1320, %v1321, %v1319
  %v1323 = vrsqrt.pop %v1034
  %v1324 = vmul.f32 %v1034, %v1323
  %vm1325 = vcmp.eq.f32.partialorder %v1034, inf
  %v1326 = vsel %vm1325, %v1034, %v1324
  %vm1327 = vcmp.eq.f32.partialorder %v1034, 0.0
  %v1328 = vand.u32 %v1034, 2147483648
  %v1329 = vsel %vm1327, %v1328, %v1326
  %v1330 = vrsqrt.pop %v1035
  %v1331 = vmul.f32 %v1035, %v1330
  %vm1332 = vcmp.eq.f32.partialorder %v1035, inf
  %v1333 = vsel %vm1332, %v1035, %v1331
  %vm1334 = vcmp.eq.f32.partialorder %v1035, 0.0
  %v1335 = vand.u32 %v1035, 2147483648
  %v1336 = vsel %vm1334, %v1335, %v1333
  %v1337 = vrsqrt.pop %v1036
  %v1338 = vmul.f32 %v1036, %v1337
  %vm1339 = vcmp.eq.f32.partialorder %v1036, inf
  %v1340 = vsel %vm1339, %v1036, %v1338
  %vm1341 = vcmp.eq.f32.partialorder %v1036, 0.0
  %v1342 = vand.u32 %v1036, 2147483648
  %v1343 = vsel %vm1341, %v1342, %v1340
  %v1344 = vrsqrt.pop %v1037
  %v1345 = vmul.f32 %v1037, %v1344
  %vm1346 = vcmp.eq.f32.partialorder %v1037, inf
  %v1347 = vsel %vm1346, %v1037, %v1345
  %vm1348 = vcmp.eq.f32.partialorder %v1037, 0.0
  %v1349 = vand.u32 %v1037, 2147483648
  %v1350 = vsel %vm1348, %v1349, %v1347
  %v1351 = vrsqrt.pop %v1038
  %v1352 = vmul.f32 %v1038, %v1351
  %vm1353 = vcmp.eq.f32.partialorder %v1038, inf
  %v1354 = vsel %vm1353, %v1038, %v1352
  %vm1355 = vcmp.eq.f32.partialorder %v1038, 0.0
  %v1356 = vand.u32 %v1038, 2147483648
  %v1357 = vsel %vm1355, %v1356, %v1354
  %v1358 = vrsqrt.pop %v1039
  %v1359 = vmul.f32 %v1039, %v1358
  %vm1360 = vcmp.eq.f32.partialorder %v1039, inf
  %v1361 = vsel %vm1360, %v1039, %v1359
  %vm1362 = vcmp.eq.f32.partialorder %v1039, 0.0
  %v1363 = vand.u32 %v1039, 2147483648
  %v1364 = vsel %vm1362, %v1363, %v1361
  %v1365 = vrsqrt.pop %v1040
  %v1366 = vmul.f32 %v1040, %v1365
  %vm1367 = vcmp.eq.f32.partialorder %v1040, inf
  %v1368 = vsel %vm1367, %v1040, %v1366
  %vm1369 = vcmp.eq.f32.partialorder %v1040, 0.0
  %v1370 = vand.u32 %v1040, 2147483648
  %v1371 = vsel %vm1369, %v1370, %v1368
  %v1372 = vrsqrt.pop %v1041
  %v1373 = vmul.f32 %v1041, %v1372
  %vm1374 = vcmp.eq.f32.partialorder %v1041, inf
  %v1375 = vsel %vm1374, %v1041, %v1373
  %vm1376 = vcmp.eq.f32.partialorder %v1041, 0.0
  %v1377 = vand.u32 %v1041, 2147483648
  %v1378 = vsel %vm1376, %v1377, %v1375
  %v1379 = vrsqrt.pop %v1042
  %v1380 = vmul.f32 %v1042, %v1379
  %vm1381 = vcmp.eq.f32.partialorder %v1042, inf
  %v1382 = vsel %vm1381, %v1042, %v1380
  %vm1383 = vcmp.eq.f32.partialorder %v1042, 0.0
  %v1384 = vand.u32 %v1042, 2147483648
  %v1385 = vsel %vm1383, %v1384, %v1382
  %v1386 = vmul.f32 %v994, %v1049
  %v1387 = vmul.f32 %v995, %v1056
  %v1388 = vmul.f32 %v996, %v1063
  %v1389 = vmul.f32 %v997, %v1070
  %v1390 = vmul.f32 %v998, %v1077
  %v1391 = vmul.f32 %v999, %v1084
  %v1392 = vmul.f32 %v1000, %v1091
  %v1393 = vmul.f32 %v1001, %v1098
  %v1394 = vmul.f32 %v1002, %v1105
  %v1395 = vmul.f32 %v1003, %v1112
  %v1396 = vmul.f32 %v1004, %v1119
  %v1397 = vmul.f32 %v1005, %v1126
  %v1398 = vmul.f32 %v1006, %v1133
  %v1399 = vmul.f32 %v1007, %v1140
  %v1400 = vmul.f32 %v1008, %v1147
  %v1401 = vmul.f32 %v1009, %v1154
  %v1402 = vmul.f32 %v1010, %v1161
  %v1403 = vmul.f32 %v1011, %v1168
  %v1404 = vmul.f32 %v1012, %v1175
  %v1405 = vmul.f32 %v1013, %v1182
  %v1406 = vmul.f32 %v1014, %v1189
  %v1407 = vmul.f32 %v1015, %v1196
  %v1408 = vmul.f32 %v1016, %v1203
  %v1409 = vmul.f32 %v1017, %v1210
  %v1410 = vmul.f32 %v1018, %v1217
  %v1411 = vmul.f32 %v1019, %v1224
  %v1412 = vmul.f32 %v1020, %v1231
  %v1413 = vmul.f32 %v1021, %v1238
  %v1414 = vmul.f32 %v1022, %v1245
  %v1415 = vmul.f32 %v1023, %v1252
  %v1416 = vmul.f32 %v1024, %v1259
  %v1417 = vmul.f32 %v1025, %v1266
  %v1418 = vmul.f32 %v1026, %v1273
  %v1419 = vmul.f32 %v1027, %v1280
  %v1420 = vmul.f32 %v1028, %v1287
  %v1421 = vmul.f32 %v1029, %v1294
  %v1422 = vmul.f32 %v1030, %v1301
  %v1423 = vmul.f32 %v1031, %v1308
  %v1424 = vmul.f32 %v1032, %v1315
  %v1425 = vmul.f32 %v1033, %v1322
  %v1426 = vmul.f32 %v1034, %v1329
  %v1427 = vmul.f32 %v1035, %v1336
  %v1428 = vmul.f32 %v1036, %v1343
  %v1429 = vmul.f32 %v1037, %v1350
  %v1430 = vmul.f32 %v1038, %v1357
  %v1431 = vmul.f32 %v1039, %v1364
  %v1432 = vmul.f32 %v1040, %v1371
  %v1433 = vmul.f32 %v1041, %v1378
  %v1434 = vmul.f32 %v1042, %v1385
  %v1435 = vmul.f32 %v8, %v1386
  %v1436 = vmul.f32 %v9, %v1387
  %v1437 = vmul.f32 %v10, %v1388
  %v1438 = vmul.f32 %v11, %v1389
  %v1439 = vmul.f32 %v12, %v1390
  %v1440 = vmul.f32 %v13, %v1391
  %v1441 = vmul.f32 %v14, %v1392
  %v1442 = vmul.f32 %v15, %v1393
  %v1443 = vmul.f32 %v16, %v1394
  %v1444 = vmul.f32 %v17, %v1395
  %v1445 = vmul.f32 %v18, %v1396
  %v1446 = vmul.f32 %v19, %v1397
  %v1447 = vmul.f32 %v20, %v1398
  %v1448 = vmul.f32 %v21, %v1399
  %v1449 = vmul.f32 %v22, %v1400
  %v1450 = vmul.f32 %v23, %v1401
  %v1451 = vmul.f32 %v24, %v1402
  %v1452 = vmul.f32 %v25, %v1403
  %v1453 = vmul.f32 %v26, %v1404
  %v1454 = vmul.f32 %v27, %v1405
  %v1455 = vmul.f32 %v28, %v1406
  %v1456 = vmul.f32 %v29, %v1407
  %v1457 = vmul.f32 %v30, %v1408
  %v1458 = vmul.f32 %v31, %v1409
  %v1459 = vmul.f32 %v32, %v1410
  %v1460 = vmul.f32 %v33, %v1411
  %v1461 = vmul.f32 %v34, %v1412
  %v1462 = vmul.f32 %v35, %v1413
  %v1463 = vmul.f32 %v36, %v1414
  %v1464 = vmul.f32 %v37, %v1415
  %v1465 = vmul.f32 %v38, %v1416
  %v1466 = vmul.f32 %v39, %v1417
  %v1467 = vmul.f32 %v40, %v1418
  %v1468 = vmul.f32 %v41, %v1419
  %v1469 = vmul.f32 %v42, %v1420
  %v1470 = vmul.f32 %v43, %v1421
  %v1471 = vmul.f32 %v44, %v1422
  %v1472 = vmul.f32 %v45, %v1423
  %v1473 = vmul.f32 %v46, %v1424
  %v1474 = vmul.f32 %v47, %v1425
  %v1475 = vmul.f32 %v48, %v1426
  %v1476 = vmul.f32 %v49, %v1427
  %v1477 = vmul.f32 %v50, %v1428
  %v1478 = vmul.f32 %v51, %v1429
  %v1479 = vmul.f32 %v52, %v1430
  %v1480 = vmul.f32 %v53, %v1431
  %v1481 = vmul.f32 %v54, %v1432
  %v1482 = vmul.f32 %v55, %v1433
  %v1483 = vmul.f32 %v56, %v1434
  %1484 = vst [vmem:[%s1] sm:$0xff] %v1435
  %1485 = vst [vmem:[%s1 + $0x8] sm:$0xff] %v1436
  %1486 = vst [vmem:[%s1 + $0x10] sm:$0xff] %v1437
  %1487 = vst [vmem:[%s1 + $0x18] sm:$0xff] %v1438
  %1488 = vst [vmem:[%s1 + $0x20] sm:$0xff] %v1439
  %1489 = vst [vmem:[%s1 + $0x28] sm:$0xff] %v1440
  %1490 = vst [vmem:[%s1 + $0x30] sm:$0xff] %v1441
  %1491 = vst [vmem:[%s1 + $0x38] sm:$0xff] %v1442
  %1492 = vst [vmem:[%s1 + $0x40] sm:$0xff] %v1443
  %1493 = vst [vmem:[%s1 + $0x48] sm:$0xff] %v1444
  %1494 = vst [vmem:[%s1 + $0x50] sm:$0xff] %v1445
  %1495 = vst [vmem:[%s1 + $0x58] sm:$0xff] %v1446
  %1496 = vst [vmem:[%s1 + $0x60] sm:$0xff] %v1447
  %1497 = vst [vmem:[%s1 + $0x68] sm:$0xff] %v1448
  %1498 = vst [vmem:[%s1 + $0x70] sm:$0xff] %v1449
  %1499 = vst [vmem:[%s1 + $0x78] sm:$0xff] %v1450
  %1500 = vst [vmem:[%s1 + $0x80] sm:$0xff] %v1451
  %1501 = vst [vmem:[%s1 + $0x88] sm:$0xff] %v1452
  %1502 = vst [vmem:[%s1 + $0x90] sm:$0xff] %v1453
  %1503 = vst [vmem:[%s1 + $0x98] sm:$0xff] %v1454
  %1504 = vst [vmem:[%s1 + $0xa0] sm:$0xff] %v1455
  %1505 = vst [vmem:[%s1 + $0xa8] sm:$0xff] %v1456
  %1506 = vst [vmem:[%s1 + $0xb0] sm:$0xff] %v1457
  %1507 = vst [vmem:[%s1 + $0xb8] sm:$0xff] %v1458
  %1508 = vst [vmem:[%s1 + $0xc0] sm:$0xff] %v1459
  %1509 = vst [vmem:[%s1 + $0xc8] sm:$0xff] %v1460
  %1510 = vst [vmem:[%s1 + $0xd0] sm:$0xff] %v1461
  %1511 = vst [vmem:[%s1 + $0xd8] sm:$0xff] %v1462
  %1512 = vst [vmem:[%s1 + $0xe0] sm:$0xff] %v1463
  %1513 = vst [vmem:[%s1 + $0xe8] sm:$0xff] %v1464
  %1514 = vst [vmem:[%s1 + $0xf0] sm:$0xff] %v1465
  %1515 = vst [vmem:[%s1 + $0xf8] sm:$0xff] %v1466
  %1516 = vst [vmem:[%s1 + $0x100] sm:$0xff] %v1467
  %1517 = vst [vmem:[%s1 + $0x108] sm:$0xff] %v1468
  %1518 = vst [vmem:[%s1 + $0x110] sm:$0xff] %v1469
  %1519 = vst [vmem:[%s1 + $0x118] sm:$0xff] %v1470
  %1520 = vst [vmem:[%s1 + $0x120] sm:$0xff] %v1471
  %1521 = vst [vmem:[%s1 + $0x128] sm:$0xff] %v1472
  %1522 = vst [vmem:[%s1 + $0x130] sm:$0xff] %v1473
  %1523 = vst [vmem:[%s1 + $0x138] sm:$0xff] %v1474
  %1524 = vst [vmem:[%s1 + $0x140] sm:$0xff] %v1475
  %1525 = vst [vmem:[%s1 + $0x148] sm:$0xff] %v1476
  %1526 = vst [vmem:[%s1 + $0x150] sm:$0xff] %v1477
  %1527 = vst [vmem:[%s1 + $0x158] sm:$0xff] %v1478
  %1528 = vst [vmem:[%s1 + $0x160] sm:$0xff] %v1479
  %1529 = vst [vmem:[%s1 + $0x168] sm:$0xff] %v1480
  %1530 = vst [vmem:[%s1 + $0x170] sm:$0xff] %v1481
  %1531 = vst [vmem:[%s1 + $0x178] sm:$0xff] %v1482
  %1532 = vst [vmem:[%s1 + $0x180] sm:$0xff] %v1483
  // Predicated region
  $region6: #{a_call__.1} parent=0 // pred_check
    _
  $region7: #{a_call__.1} parent=0 // pred_check_branch
    %1534 = sbr.rel (0) target = $region9
  $region8: #{a_call__.1} parent=0 // pred_region
    _
  $region9: #{a_call__.1} parent=0 // pred_fallthru
    _
  // Predicated region
  $region10: #{a_call__.1} parent=0 // pred_check
    _
  $region11: #{a_call__.1} parent=0 // pred_check_branch
    %1536 = sbr.rel (0) target = $region13
  $region12: #{a_call__.1} parent=0 // pred_region
    _
  $region13: #{a_call__.1} parent=0 // pred_fallthru
    _

</llo_original>
